<compile_context>
chip_gen: v6e
topology: v6e:2x2x1
jax: 0.10.0
libtpu: 0.0.40
codegen_flags: <defaults>
</compile_context>

<pallas_src>
import functools

import jax
import jax.numpy as jnp
from jax.experimental import pallas as pl
from jax.experimental.pallas import tpu as pltpu

# ---------------- true (unpadded) model dimensions ----------------
D_IN, D_H1, D_H2, D_OUT = 439, 900, 100, 2


def _round_up(x, m):
    return ((x + m - 1) // m) * m


def _cdiv(a, b):
    return -(-a // b)


# lane-padded dims (weights padded once, offline; activations never padded in HBM)
D_IN_P = _round_up(D_IN, 128)    # 512
D_H1_P = _round_up(D_H1, 128)    # 1024
D_H2_P = _round_up(D_H2, 128)    # 128
D_OUT_P = _round_up(D_OUT, 128)  # 128


# ---------------- the fused MLP kernel ----------------
def mlp_kernel(x_ref, w1_ref, b1_ref, w2_ref, b2_ref, w3_ref, b3_ref, o_ref,
               xpad_ref):
    # Stage the f32 [bt, 439] activation tile into a zero-padded bf16 [bt, 512]
    # VMEM scratch so the layer-1 matmul sees a lane-aligned K.  Zeroing is done
    # unconditionally (not gated on program_id==0) so it stays correct when the
    # "parallel" grid axis is sharded across v7x's two TensorCores.
    xpad_ref[...] = jnp.zeros_like(xpad_ref)
    xpad_ref[:, :D_IN] = x_ref[...].astype(xpad_ref.dtype)

    wdt = w1_ref.dtype  # bf16 (or f32) weight compute dtype

    # layer 1 + ReLU  (bf16 x bf16 -> f32 accumulate on the MXU)
    h1 = jnp.dot(xpad_ref[...], w1_ref[...],
                 preferred_element_type=jnp.float32) + b1_ref[...]
    h1 = jnp.maximum(h1, 0.0)

    # layer 2 + ReLU
    h2 = jnp.dot(h1.astype(wdt), w2_ref[...],
                 preferred_element_type=jnp.float32) + b2_ref[...]
    h2 = jnp.maximum(h2, 0.0)

    # layer 3 + sigmoid (only the 2 real logits are kept; recip on the EUP)
    z = jnp.dot(h2.astype(wdt), w3_ref[...],
                preferred_element_type=jnp.float32) + b3_ref[...]
    z = z[:, :D_OUT]
    o_ref[...] = pl.reciprocal(1.0 + jnp.exp(-z), approx=True)


# ---------------- one-time parameter padding (hoisted out of forward) ----------------
def prepare_params(params, weight_dtype=jnp.bfloat16):
    """Zero-pad params to lane-aligned shapes once; weights cast to `weight_dtype`."""
    w1, b1, w2, b2, w3, b3 = params

    def pad_w(w, rows, cols):
        out = jnp.zeros((rows, cols), jnp.float32)
        out = out.at[: w.shape[0], : w.shape[1]].set(w)
        return out.astype(weight_dtype)

    def pad_b(b, cols):
        return jnp.zeros((1, cols), jnp.float32).at[0, : b.shape[0]].set(b)

    return (
        pad_w(w1, D_IN_P, D_H1_P), pad_b(b1, D_H1_P),
        pad_w(w2, D_H1_P, D_H2_P), pad_b(b2, D_H2_P),
        pad_w(w3, D_H2_P, D_OUT_P), pad_b(b3, D_OUT_P),
    )


# ---------------- tile selection ----------------
def _choose_batch_tile(B, batch_tile):
    # Balanced tiles (minimal row padding), capped at batch_tile, rounded to a
    # sublane-friendly multiple of 16; force >=2 tiles once B is big enough so
    # dimension_semantics=("parallel",) can use v7x's second TensorCore.
    n_tiles = _cdiv(B, batch_tile)
    if B >= 64:
        n_tiles = max(n_tiles, 2)
    bt = _round_up(_cdiv(B, n_tiles), 16)
    bt = min(bt, _round_up(B, 8))   # tiny batches: don't inflate 8 rows to 16
    return max(bt, 8)


# ---------------- forward pass ----------------
@functools.partial(jax.jit, static_argnames=("batch_tile",))
def classifier_forward(x, padded_params, batch_tile=512):
    """x: [B, 439] float32 -> [B, 2] float32 (sigmoid probabilities)."""
    w1_p, b1_p, w2_p, b2_p, w3_p, b3_p = padded_params
    B = x.shape[0]
    x = x.astype(jnp.float32)

    bt = _choose_batch_tile(B, batch_tile)
    grid = (_cdiv(B, bt),)

    # Advisory cost estimate: weights/biases counted ONCE (grid-invariant).
    w_bytes = sum(int(w.size) * w.dtype.itemsize for w in (w1_p, w2_p, w3_p))
    b_bytes = sum(int(b.size) * b.dtype.itemsize for b in (b1_p, b2_p, b3_p))
    rows = grid[0] * bt
    cost = pl.CostEstimate(
        flops=2 * rows * (D_IN_P * D_H1_P + D_H1_P * D_H2_P + D_H2_P * D_OUT_P),
        transcendentals=rows * D_OUT,
        bytes_accessed=B * D_IN * 4 + B * D_OUT * 4 + w_bytes + b_bytes,
    )

    out = pl.pallas_call(
        mlp_kernel,
        out_shape=jax.ShapeDtypeStruct((B, D_OUT), jnp.float32),
        grid_spec=pltpu.PrefetchScalarGridSpec(
            num_scalar_prefetch=0,
            grid=grid,
            in_specs=[
                pl.BlockSpec((bt, D_IN), lambda i: (i, 0)),          # x tile (unpadded; no HBM copy)
                pl.BlockSpec((D_IN_P, D_H1_P), lambda i: (0, 0)),    # W1 (grid-invariant)
                pl.BlockSpec((1, D_H1_P), lambda i: (0, 0)),         # b1
                pl.BlockSpec((D_H1_P, D_H2_P), lambda i: (0, 0)),    # W2
                pl.BlockSpec((1, D_H2_P), lambda i: (0, 0)),         # b2
                pl.BlockSpec((D_H2_P, D_OUT_P), lambda i: (0, 0)),   # W3
                pl.BlockSpec((1, D_OUT_P), lambda i: (0, 0)),        # b3
            ],
            out_specs=pl.BlockSpec((bt, D_OUT), lambda i: (i, 0)),   # narrow (bt, 2) output
            scratch_shapes=[pltpu.VMEM((bt, D_IN_P), jnp.bfloat16)], # padded x staging
        ),
        compiler_params=pltpu.CompilerParams(
            dimension_semantics=("parallel",),
            vmem_limit_bytes=32 * 1024 * 1024,
        ),
        cost_estimate=cost,
    )(x, w1_p, b1_p, w2_p, b2_p, w3_p, b3_p)

    return out


# ---------------- deterministic parameter init (PyTorch-style uniform) ----------------
def init_params(key):
    def linear(key, fan_in, fan_out):
        k_w, k_b = jax.random.split(key)
        bound = 1.0 / jnp.sqrt(fan_in)
        # stored as [in, out] (transpose of torch's [out, in]) so kernel does x @ W
        w = jax.random.uniform(k_w, (fan_in, fan_out), jnp.float32, -bound, bound)
        b = jax.random.uniform(k_b, (fan_out,), jnp.float32, -bound, bound)
        return w, b

    k1, k2, k3 = jax.random.split(key, 3)
    w1, b1 = linear(k1, D_IN, D_H1)
    w2, b2 = linear(k2, D_H1, D_H2)
    w3, b3 = linear(k3, D_H2, D_OUT)
    return (w1, b1, w2, b2, w3, b3)


# ---------------- pure-JAX f32 reference for sanity ----------------
def reference_forward(x, params):
    w1, b1, w2, b2, w3, b3 = params
    h1 = jnp.maximum(x @ w1 + b1, 0.0)
    h2 = jnp.maximum(h1 @ w2 + b2, 0.0)
    return jax.nn.sigmoid(h2 @ w3 + b3)


if __name__ == "__main__":
    key = jax.random.PRNGKey(0)
    k_params, k_x1, k_x2 = jax.random.split(key, 3)

    params = init_params(k_params)
    padded_params = prepare_params(params, weight_dtype=jnp.bfloat16)

    # small batch (single grid step) and a batch that exercises 2 grid steps
    # with a partial last tile (B=300 -> two 160-row tiles).
    for bsz, kx in ((8, k_x1), (300, k_x2)):
        x = jax.random.normal(kx, (bsz, D_IN), dtype=jnp.float32)
        out = jax.block_until_ready(classifier_forward(x, padded_params))
        ref = reference_forward(x, params)
        assert out.shape == (bsz, D_OUT)
        # bf16 weight/activation rounding through 3 layers -> loose tolerance
        err = float(jnp.max(jnp.abs(out - ref)))
        assert jnp.allclose(out, ref, atol=2e-2, rtol=0.0), err

    print("KERNEL_OK")
</pallas_src>

<mosaic_0001>
module attributes {stable_mosaic.version = 11 : i64} {
  func.func @mlp_kernel(%arg0: i32, %arg1: memref<8x439xf32, #tpu.memory_space<vmem>>, %arg2: memref<512x1024xbf16, #tpu.memory_space<vmem>>, %arg3: memref<1x1024xf32, #tpu.memory_space<vmem>>, %arg4: memref<1024x128xbf16, #tpu.memory_space<vmem>>, %arg5: memref<1x128xf32, #tpu.memory_space<vmem>>, %arg6: memref<128x128xbf16, #tpu.memory_space<vmem>>, %arg7: memref<1x128xf32, #tpu.memory_space<vmem>>, %arg8: memref<8x2xf32, #tpu.memory_space<vmem>>, %arg9: memref<8x512xbf16, #tpu.memory_space<vmem>>) attributes {dimension_semantics = [#tpu.dimension_semantics<parallel>], iteration_bounds = array<i64: 1>, scalar_prefetch = 0 : i64, scratch_operands = 1 : i64, tpu.core_type = #tpu.core_type<tc>, window_params = [{transform_indices = @transform_0, window_bounds = array<i64: 8, 439>}, {pipeline_mode = #tpu.pipeline_mode<synchronous>, transform_indices = @transform_1, window_bounds = array<i64: 512, 1024>}, {pipeline_mode = #tpu.pipeline_mode<synchronous>, transform_indices = @transform_2, window_bounds = array<i64: 1, 1024>}, {pipeline_mode = #tpu.pipeline_mode<synchronous>, transform_indices = @transform_3, window_bounds = array<i64: 1024, 128>}, {pipeline_mode = #tpu.pipeline_mode<synchronous>, transform_indices = @transform_4, window_bounds = array<i64: 1, 128>}, {pipeline_mode = #tpu.pipeline_mode<synchronous>, transform_indices = @transform_5, window_bounds = array<i64: 128, 128>}, {pipeline_mode = #tpu.pipeline_mode<synchronous>, transform_indices = @transform_6, window_bounds = array<i64: 1, 128>}, {transform_indices = @transform_7, window_bounds = array<i64: 8, 2>}]} {
    %cst = arith.constant 0.000000e+00 : bf16
    %0 = vector.broadcast %cst : bf16 to vector<8x512xbf16>
    %c0 = arith.constant 0 : index
    %c0_0 = arith.constant 0 : index
    %1 = vector.load %arg9[%c0, %c0_0] : memref<8x512xbf16, #tpu.memory_space<vmem>>, vector<8x512xbf16>
    tpu.vector_store %arg9[%c0, %c0_0], %0 {strides = array<i32>} : memref<8x512xbf16, #tpu.memory_space<vmem>>, vector<8x512xbf16>,
    %c0_1 = arith.constant 0 : index
    %c0_2 = arith.constant 0 : index
    %2 = vector.load %arg1[%c0_1, %c0_2] : memref<8x439xf32, #tpu.memory_space<vmem>>, vector<8x439xf32>
    %3 = arith.truncf %2 : vector<8x439xf32> to vector<8x439xbf16>
    %c0_3 = arith.constant 0 : index
    %c0_4 = arith.constant 0 : index
    %4 = vector.load %arg9[%c0_3, %c0_4] : memref<8x512xbf16, #tpu.memory_space<vmem>>, vector<8x439xbf16>
    tpu.vector_store %arg9[%c0_3, %c0_4], %3 {strides = array<i32>} : memref<8x512xbf16, #tpu.memory_space<vmem>>, vector<8x439xbf16>,
    %c0_5 = arith.constant 0 : index
    %c0_6 = arith.constant 0 : index
    %5 = vector.load %arg9[%c0_5, %c0_6] : memref<8x512xbf16, #tpu.memory_space<vmem>>, vector<8x512xbf16>
    %c0_7 = arith.constant 0 : index
    %c0_8 = arith.constant 0 : index
    %6 = vector.load %arg2[%c0_7, %c0_8] : memref<512x1024xbf16, #tpu.memory_space<vmem>>, vector<512x1024xbf16>
    %cst_9 = arith.constant dense<0.000000e+00> : vector<8x1024xf32>
    %7 = tpu.matmul %5, %6, %cst_9 {dimension_numbers = #tpu.dot_dimension_numbers<[1], [0], [0], [1], [0, 0, 1, 1], [], []>} : vector<8x512xbf16>, vector<512x1024xbf16>, vector<8x1024xf32> -> vector<8x1024xf32>
    %c0_10 = arith.constant 0 : index
    %c0_11 = arith.constant 0 : index
    %8 = vector.load %arg3[%c0_10, %c0_11] : memref<1x1024xf32, #tpu.memory_space<vmem>>, vector<1x1024xf32>
    %9 = vector.broadcast %8 : vector<1x1024xf32> to vector<8x1024xf32>
    %10 = arith.addf %7, %9 : vector<8x1024xf32>
    %cst_12 = arith.constant 0.000000e+00 : f32
    %11 = vector.broadcast %cst_12 : f32 to vector<8x1024xf32>
    %12 = arith.maximumf %10, %11 : vector<8x1024xf32>
    %13 = arith.truncf %12 : vector<8x1024xf32> to vector<8x1024xbf16>
    %c0_13 = arith.constant 0 : index
    %c0_14 = arith.constant 0 : index
    %14 = vector.load %arg4[%c0_13, %c0_14] : memref<1024x128xbf16, #tpu.memory_space<vmem>>, vector<1024x128xbf16>
    %cst_15 = arith.constant dense<0.000000e+00> : vector<8x128xf32>
    %15 = tpu.matmul %13, %14, %cst_15 {dimension_numbers = #tpu.dot_dimension_numbers<[1], [0], [0], [1], [0, 0, 1, 1], [], []>} : vector<8x1024xbf16>, vector<1024x128xbf16>, vector<8x128xf32> -> vector<8x128xf32>
    %c0_16 = arith.constant 0 : index
    %c0_17 = arith.constant 0 : index
    %16 = vector.load %arg5[%c0_16, %c0_17] : memref<1x128xf32, #tpu.memory_space<vmem>>, vector<1x128xf32>
    %17 = vector.broadcast %16 : vector<1x128xf32> to vector<8x128xf32>
    %18 = arith.addf %15, %17 : vector<8x128xf32>
    %cst_18 = arith.constant 0.000000e+00 : f32
    %19 = vector.broadcast %cst_18 : f32 to vector<8x128xf32>
    %20 = arith.maximumf %18, %19 : vector<8x128xf32>
    %21 = arith.truncf %20 : vector<8x128xf32> to vector<8x128xbf16>
    %c0_19 = arith.constant 0 : index
    %c0_20 = arith.constant 0 : index
    %22 = vector.load %arg6[%c0_19, %c0_20] : memref<128x128xbf16, #tpu.memory_space<vmem>>, vector<128x128xbf16>
    %cst_21 = arith.constant dense<0.000000e+00> : vector<8x128xf32>
    %23 = tpu.matmul %21, %22, %cst_21 {dimension_numbers = #tpu.dot_dimension_numbers<[1], [0], [0], [1], [0, 0, 1, 1], [], []>} : vector<8x128xbf16>, vector<128x128xbf16>, vector<8x128xf32> -> vector<8x128xf32>
    %c0_22 = arith.constant 0 : index
    %c0_23 = arith.constant 0 : index
    %24 = vector.load %arg7[%c0_22, %c0_23] : memref<1x128xf32, #tpu.memory_space<vmem>>, vector<1x128xf32>
    %25 = vector.broadcast %24 : vector<1x128xf32> to vector<8x128xf32>
    %26 = arith.addf %23, %25 : vector<8x128xf32>
    %27 = vector.extract_strided_slice %26 {offsets = [0, 0], sizes = [8, 2], strides = [1, 1]} : vector<8x128xf32> to vector<8x2xf32>
    %cst_24 = arith.constant 0.000000e+00 : f32
    %28 = vector.broadcast %cst_24 : f32 to vector<8x2xf32>
    %29 = arith.subf %28, %27 : vector<8x2xf32>
    %30 = math.exp %29 : vector<8x2xf32>
    %cst_25 = arith.constant 1.000000e+00 : f32
    %31 = vector.broadcast %cst_25 : f32 to vector<8x2xf32>
    %32 = arith.addf %31, %30 : vector<8x2xf32>
    %33 = tpu.reciprocal %32 {approx = true} : vector<8x2xf32> -> vector<8x2xf32>
    %c0_26 = arith.constant 0 : index
    %c0_27 = arith.constant 0 : index
    %34 = vector.load %arg8[%c0_26, %c0_27] : memref<8x2xf32, #tpu.memory_space<vmem>>, vector<8x2xf32>
    tpu.vector_store %arg8[%c0_26, %c0_27], %33 {strides = array<i32>} : memref<8x2xf32, #tpu.memory_space<vmem>>, vector<8x2xf32>,
    return
  }
  func.func @transform_0(%arg0: i32) -> (i32, i32) {
    %c0_i32 = arith.constant 0 : i32
    %c0_i32_0 = arith.constant 0 : i32
    return %arg0, %c0_i32 : i32, i32
  }
  func.func @transform_1(%arg0: i32) -> (i32, i32) {
    %c0_i32 = arith.constant 0 : i32
    %c0_i32_0 = arith.constant 0 : i32
    %c0_i32_1 = arith.constant 0 : i32
    return %c0_i32, %c0_i32_0 : i32, i32
  }
  func.func @transform_2(%arg0: i32) -> (i32, i32) {
    %c0_i32 = arith.constant 0 : i32
    %c0_i32_0 = arith.constant 0 : i32
    %c0_i32_1 = arith.constant 0 : i32
    return %c0_i32, %c0_i32_0 : i32, i32
  }
  func.func @transform_3(%arg0: i32) -> (i32, i32) {
    %c0_i32 = arith.constant 0 : i32
    %c0_i32_0 = arith.constant 0 : i32
    %c0_i32_1 = arith.constant 0 : i32
    return %c0_i32, %c0_i32_0 : i32, i32
  }
  func.func @transform_4(%arg0: i32) -> (i32, i32) {
    %c0_i32 = arith.constant 0 : i32
    %c0_i32_0 = arith.constant 0 : i32
    %c0_i32_1 = arith.constant 0 : i32
    return %c0_i32, %c0_i32_0 : i32, i32
  }
  func.func @transform_5(%arg0: i32) -> (i32, i32) {
    %c0_i32 = arith.constant 0 : i32
    %c0_i32_0 = arith.constant 0 : i32
    %c0_i32_1 = arith.constant 0 : i32
    return %c0_i32, %c0_i32_0 : i32, i32
  }
  func.func @transform_6(%arg0: i32) -> (i32, i32) {
    %c0_i32 = arith.constant 0 : i32
    %c0_i32_0 = arith.constant 0 : i32
    %c0_i32_1 = arith.constant 0 : i32
    return %c0_i32, %c0_i32_0 : i32, i32
  }
  func.func @transform_7(%arg0: i32) -> (i32, i32) {
    %c0_i32 = arith.constant 0 : i32
    %c0_i32_0 = arith.constant 0 : i32
    return %arg0, %c0_i32 : i32, i32
  }
}

</mosaic_0001>

<llo_original>
// kernel: classifier_forward.1
$region0: #{classifier_forward.1}
  #allocation0 [shape = 'u32[]', space=smem, size = 0x4, offset = 0x4, fixed_abs, tag = 'smem constant byte address 0x4 - core index']
  #allocation1 [shape = 'u32[144,128]{1,0:T(1,128)}', space=vmem, size = 0x12000, scoped, tag = 'internal scratch']
  #allocation2 [shape = 'bf16[8,512]{1,0:T(8,128)(2,1)}', space=vmem, size = 0x2000, scoped, tag = 'scratch operand']
  %s0 = inlined_call_operand.hbm [shape: f32[8,439], index: 0, kind: input, shape index: {}]
  %s1 = inlined_call_operand.hbm [shape: bf16[512,1024], index: 1, kind: input, shape index: {}]
  %s2 = inlined_call_operand.hbm [shape: f32[1,1024], index: 2, kind: input, shape index: {}]
  %s3 = inlined_call_operand.hbm [shape: bf16[1024,128], index: 3, kind: input, shape index: {}]
  %s4 = inlined_call_operand.vmem [shape: f32[1,128], index: 4, kind: input, shape index: {}]
  %s5 = inlined_call_operand.hbm [shape: bf16[128,128], index: 5, kind: input, shape index: {}]
  %s6 = inlined_call_operand.vmem [shape: f32[1,128], index: 6, kind: input, shape index: {}]
  %s7 = inlined_call_operand.vmem [shape: f32[8,2], index: 7, kind: output, shape index: {}]
  %s8 = sld [smem:[#allocation0]]
  $region58: #{classifier_forward.1} parent=0
    _
  %s10 = ssub.s32 1, %s8
  %s11 = scalar_select 0, %s10, %s8
  $region1: #{classifier_forward.1} parent=0
    #allocation3 [shape = 'u8[16384]{0}', space=vmem, size = 0x4000, scoped, tag = 'input window, operand 0, single buffered']
    #allocation4 [shape = 's32[1]{0}', space=sflag, size = 0x4, scoped, tag = 'scoped memory for classifier_forward.1']
    #allocation5 [shape = 'u8[1048576]{0}', space=vmem, size = 0x100000, scoped, tag = 'input window, operand 1, single buffered']
    #allocation6 [shape = 's32[1]{0}', space=sflag, size = 0x4, scoped, tag = 'scoped memory for classifier_forward.1']
    #allocation7 [shape = 'u8[4096]{0}', space=vmem, size = 0x1000, scoped, tag = 'input window, operand 2, single buffered']
    #allocation8 [shape = 'u8[262144]{0}', space=vmem, size = 0x40000, scoped, tag = 'input window, operand 3, single buffered']
    #allocation9 [shape = 's32[1]{0}', space=sflag, size = 0x4, scoped, tag = 'scoped memory for classifier_forward.1']
    #allocation10 [shape = 'u8[32768]{0}', space=vmem, size = 0x8000, scoped, tag = 'input window, operand 5, single buffered']
    %12 = vsyncpa [#allocation4], 0
    %13 = vsyncpa [#allocation6], 0
    %14 = vsyncpa [#allocation9], 0
    // Predicated region
    $region2: #{classifier_forward.1} parent=1 // pred_check
      _
    $region3: #{classifier_forward.1} parent=1 // pred_check_branch
      %16 = sbr.rel (0) target = $region5
    $region4: #{classifier_forward.1} parent=1 // pred_region
      %s18 = ssub.s32 512, 512
      %19 = vsyncadd [#allocation4], %s18
      %s21 = sshll.u32 [#allocation3], 4
      %s22 = int_to_ptr.vmem [resolvable:$true] %s21
      %24 = dma.hbm_to_vmem [thread:$0]  %s0, 512, %s22, [#allocation4]
    $region5: #{classifier_forward.1} parent=1 // pred_fallthru
      _
    // Predicated region
    $region6: #{classifier_forward.1} parent=1 // pred_check
      _
    $region7: #{classifier_forward.1} parent=1 // pred_check_branch
      %26 = sbr.rel (0) target = $region9
    $region8: #{classifier_forward.1} parent=1 // pred_region
      %s28 = ssub.s32 32768, 32768
      %29 = vsyncadd [#allocation6], %s28
      %s30 = sshll.u32 [#allocation5], 4
      %s31 = int_to_ptr.vmem [resolvable:$true] %s30
      %36 = dma.hbm_to_vmem [thread:$0]  %s1, 32768, %s31, [#allocation6], 512, 512, 32
    $region9: #{classifier_forward.1} parent=1 // pred_fallthru
      _
    // Predicated region
    $region10: #{classifier_forward.1} parent=1 // pred_check
      _
    $region11: #{classifier_forward.1} parent=1 // pred_check_branch
      %38 = sbr.rel (0) target = $region13
    $region12: #{classifier_forward.1} parent=1 // pred_region
      %s40 = ssub.s32 128, 128
      %41 = vsyncadd [#allocation6], %s40
      %s43 = sshll.u32 [#allocation7], 4
      %s44 = int_to_ptr.vmem [resolvable:$true] %s43
      %46 = dma.hbm_to_vmem [thread:$0]  %s2, 128, %s44, [#allocation6]
    $region13: #{classifier_forward.1} parent=1 // pred_fallthru
      _
    // Predicated region
    $region14: #{classifier_forward.1} parent=1 // pred_check
      _
    $region15: #{classifier_forward.1} parent=1 // pred_check_branch
      %48 = sbr.rel (0) target = $region17
    $region16: #{classifier_forward.1} parent=1 // pred_region
      %s50 = ssub.s32 8192, 8192
      %51 = vsyncadd [#allocation9], %s50
      %s52 = sshll.u32 [#allocation8], 4
      %s53 = int_to_ptr.vmem [resolvable:$true] %s52
      %58 = dma.hbm_to_vmem [thread:$0]  %s3, 8192, %s53, [#allocation9], 64, 64, 4
    $region17: #{classifier_forward.1} parent=1 // pred_fallthru
      _
    // Predicated region
    $region18: #{classifier_forward.1} parent=1 // pred_check
      _
    $region19: #{classifier_forward.1} parent=1 // pred_check_branch
      %60 = sbr.rel (0) target = $region21
    $region20: #{classifier_forward.1} parent=1 // pred_region
      _
    $region21: #{classifier_forward.1} parent=1 // pred_fallthru
      _
    // Predicated region
    $region22: #{classifier_forward.1} parent=1 // pred_check
      _
    $region23: #{classifier_forward.1} parent=1 // pred_check_branch
      %62 = sbr.rel (0) target = $region25
    $region24: #{classifier_forward.1} parent=1 // pred_region
      %s64 = ssub.s32 1024, 1024
      %65 = vsyncadd [#allocation9], %s64
      %s66 = sshll.u32 [#allocation10], 4
      %s67 = int_to_ptr.vmem [resolvable:$true] %s66
      %72 = dma.hbm_to_vmem [thread:$0]  %s5, 1024, %s67, [#allocation9], 64, 64, 4
    $region25: #{classifier_forward.1} parent=1 // pred_fallthru
      _
    // Predicated region
    $region26: #{classifier_forward.1} parent=1 // pred_check
      _
    $region27: #{classifier_forward.1} parent=1 // pred_check_branch
      %74 = sbr.rel (0) target = $region29
    $region28: #{classifier_forward.1} parent=1 // pred_region
      _
    $region29: #{classifier_forward.1} parent=1 // pred_fallthru
      _
    // Predicated region
    $region30: #{classifier_forward.1} parent=1 // pred_check
      _
    $region31: #{classifier_forward.1} parent=1 // pred_check_branch
      %76 = sbr.rel (0) target = $region33
    $region32: #{classifier_forward.1} parent=1 // pred_region
      %77 = dma.done [#allocation4], 512
    $region33: #{classifier_forward.1} parent=1 // pred_fallthru
      _
    // Predicated region
    $region34: #{classifier_forward.1} parent=1 // pred_check
      _
    $region35: #{classifier_forward.1} parent=1 // pred_check_branch
      %79 = sbr.rel (0) target = $region37
    $region36: #{classifier_forward.1} parent=1 // pred_region
      %80 = dma.done [#allocation6], 32768
    $region37: #{classifier_forward.1} parent=1 // pred_fallthru
      _
    // Predicated region
    $region38: #{classifier_forward.1} parent=1 // pred_check
      _
    $region39: #{classifier_forward.1} parent=1 // pred_check_branch
      %82 = sbr.rel (0) target = $region41
    $region40: #{classifier_forward.1} parent=1 // pred_region
      %83 = dma.done [#allocation6], 128
    $region41: #{classifier_forward.1} parent=1 // pred_fallthru
      _
    // Predicated region
    $region42: #{classifier_forward.1} parent=1 // pred_check
      _
    $region43: #{classifier_forward.1} parent=1 // pred_check_branch
      %85 = sbr.rel (0) target = $region45
    $region44: #{classifier_forward.1} parent=1 // pred_region
      %86 = dma.done [#allocation9], 8192
    $region45: #{classifier_forward.1} parent=1 // pred_fallthru
      _
    // Predicated region
    $region46: #{classifier_forward.1} parent=1 // pred_check
      _
    $region47: #{classifier_forward.1} parent=1 // pred_check_branch
      %88 = sbr.rel (0) target = $region49
    $region48: #{classifier_forward.1} parent=1 // pred_region
      %89 = dma.done [#allocation9], 1024
    $region49: #{classifier_forward.1} parent=1 // pred_fallthru
      _
    %91 = vst [vmem:[#allocation2] sm:$0xff] 0
    %92 = vst [vmem:[#allocation2 + $0x8] sm:$0xff] 0
    %v93 = vld [vmem:[#allocation3] sm:$0xff]
    %v94 = vld [vmem:[#allocation3 + $0x8] sm:$0xff]
    %v95 = vld [vmem:[#allocation3 + $0x10] sm:$0xff]
    %v96 = vld [vmem:[#allocation3 + $0x18] sm:$0xff]
    %v97 = vpack.c.bf16 %v93, %v93
    %v98 = vpack.c.bf16 %v94, %v94
    %v99 = vpack.c.bf16 %v95, %v95
    %v100 = vpack.c.bf16 %v96, %v96
    %v105 = vunpack.c.l.b16 %v97
    %v106 = vunpack.c.l.b16 %v98
    %v107 = vunpack.c.l.b16 %v99
    %v108 = vunpack.c.l.b16 %v100
    %v109 = vpack.c.b16 %v106, %v105
    %v110 = vpack.c.b16 %v108, %v107
    %113 = vst [vmem:[#allocation2] sm:$0xff] %v109
    %vm114 = vcmask 1043456
    %vm115 = vcmask 449540
    %vm116 = vmor %vm115, %vm114
    %117 = vst.msk [vmem:[#allocation2 + $0x8] sm:$0xff] %vm116, %v110
    %v118 = vld [vmem:[#allocation2] sm:$0xff]
    %v119 = vld [vmem:[#allocation2 + $0x8] sm:$0xff]
    %v120 = vld [vmem:[#allocation5] sm:$0xff]
    %v121 = vld [vmem:[#allocation5 + $0x8] sm:$0xff]
    %v122 = vld [vmem:[#allocation5 + $0x10] sm:$0xff]
    %v123 = vld [vmem:[#allocation5 + $0x18] sm:$0xff]
    %v124 = vld [vmem:[#allocation5 + $0x20] sm:$0xff]
    %v125 = vld [vmem:[#allocation5 + $0x28] sm:$0xff]
    %v126 = vld [vmem:[#allocation5 + $0x30] sm:$0xff]
    %v127 = vld [vmem:[#allocation5 + $0x38] sm:$0xff]
    %v128 = vld [vmem:[#allocation5 + $0x40] sm:$0xff]
    %v129 = vld [vmem:[#allocation5 + $0x48] sm:$0xff]
    %v130 = vld [vmem:[#allocation5 + $0x50] sm:$0xff]
    %v131 = vld [vmem:[#allocation5 + $0x58] sm:$0xff]
    %v132 = vld [vmem:[#allocation5 + $0x60] sm:$0xff]
    %v133 = vld [vmem:[#allocation5 + $0x68] sm:$0xff]
    %v134 = vld [vmem:[#allocation5 + $0x70] sm:$0xff]
    %v135 = vld [vmem:[#allocation5 + $0x78] sm:$0xff]
    %v136 = vld [vmem:[#allocation5 + $0x80] sm:$0xff]
    %v137 = vld [vmem:[#allocation5 + $0x88] sm:$0xff]
    %v138 = vld [vmem:[#allocation5 + $0x90] sm:$0xff]
    %v139 = vld [vmem:[#allocation5 + $0x98] sm:$0xff]
    %v140 = vld [vmem:[#allocation5 + $0xa0] sm:$0xff]
    %v141 = vld [vmem:[#allocation5 + $0xa8] sm:$0xff]
    %v142 = vld [vmem:[#allocation5 + $0xb0] sm:$0xff]
    %v143 = vld [vmem:[#allocation5 + $0xb8] sm:$0xff]
    %v144 = vld [vmem:[#allocation5 + $0xc0] sm:$0xff]
    %v145 = vld [vmem:[#allocation5 + $0xc8] sm:$0xff]
    %v146 = vld [vmem:[#allocation5 + $0xd0] sm:$0xff]
    %v147 = vld [vmem:[#allocation5 + $0xd8] sm:$0xff]
    %v148 = vld [vmem:[#allocation5 + $0xe0] sm:$0xff]
    %v149 = vld [vmem:[#allocation5 + $0xe8] sm:$0xff]
    %v150 = vld [vmem:[#allocation5 + $0xf0] sm:$0xff]
    %v151 = vld [vmem:[#allocation5 + $0xf8] sm:$0xff]
    %v152 = vld [vmem:[#allocation5 + $0x100] sm:$0xff]
    %v153 = vld [vmem:[#allocation5 + $0x108] sm:$0xff]
    %v154 = vld [vmem:[#allocation5 + $0x110] sm:$0xff]
    %v155 = vld [vmem:[#allocation5 + $0x118] sm:$0xff]
    %v156 = vld [vmem:[#allocation5 + $0x120] sm:$0xff]
    %v157 = vld [vmem:[#allocation5 + $0x128] sm:$0xff]
    %v158 = vld [vmem:[#allocation5 + $0x130] sm:$0xff]
    %v159 = vld [vmem:[#allocation5 + $0x138] sm:$0xff]
    %v160 = vld [vmem:[#allocation5 + $0x140] sm:$0xff]
    %v161 = vld [vmem:[#allocation5 + $0x148] sm:$0xff]
    %v162 = vld [vmem:[#allocation5 + $0x150] sm:$0xff]
    %v163 = vld [vmem:[#allocation5 + $0x158] sm:$0xff]
    %v164 = vld [vmem:[#allocation5 + $0x160] sm:$0xff]
    %v165 = vld [vmem:[#allocation5 + $0x168] sm:$0xff]
    %v166 = vld [vmem:[#allocation5 + $0x170] sm:$0xff]
    %v167 = vld [vmem:[#allocation5 + $0x178] sm:$0xff]
    %v168 = vld [vmem:[#allocation5 + $0x180] sm:$0xff]
    %v169 = vld [vmem:[#allocation5 + $0x188] sm:$0xff]
    %v170 = vld [vmem:[#allocation5 + $0x190] sm:$0xff]
    %v171 = vld [vmem:[#allocation5 + $0x198] sm:$0xff]
    %v172 = vld [vmem:[#allocation5 + $0x1a0] sm:$0xff]
    %v173 = vld [vmem:[#allocation5 + $0x1a8] sm:$0xff]
    %v174 = vld [vmem:[#allocation5 + $0x1b0] sm:$0xff]
    %v175 = vld [vmem:[#allocation5 + $0x1b8] sm:$0xff]
    %v176 = vld [vmem:[#allocation5 + $0x1c0] sm:$0xff]
    %v177 = vld [vmem:[#allocation5 + $0x1c8] sm:$0xff]
    %v178 = vld [vmem:[#allocation5 + $0x1d0] sm:$0xff]
    %v179 = vld [vmem:[#allocation5 + $0x1d8] sm:$0xff]
    %v180 = vld [vmem:[#allocation5 + $0x1e0] sm:$0xff]
    %v181 = vld [vmem:[#allocation5 + $0x1e8] sm:$0xff]
    %v182 = vld [vmem:[#allocation5 + $0x1f0] sm:$0xff]
    %v183 = vld [vmem:[#allocation5 + $0x1f8] sm:$0xff]
    %v184 = vld [vmem:[#allocation5 + $0x200] sm:$0xff]
    %v185 = vld [vmem:[#allocation5 + $0x208] sm:$0xff]
    %v186 = vld [vmem:[#allocation5 + $0x210] sm:$0xff]
    %v187 = vld [vmem:[#allocation5 + $0x218] sm:$0xff]
    %v188 = vld [vmem:[#allocation5 + $0x220] sm:$0xff]
    %v189 = vld [vmem:[#allocation5 + $0x228] sm:$0xff]
    %v190 = vld [vmem:[#allocation5 + $0x230] sm:$0xff]
    %v191 = vld [vmem:[#allocation5 + $0x238] sm:$0xff]
    %v192 = vld [vmem:[#allocation5 + $0x240] sm:$0xff]
    %v193 = vld [vmem:[#allocation5 + $0x248] sm:$0xff]
    %v194 = vld [vmem:[#allocation5 + $0x250] sm:$0xff]
    %v195 = vld [vmem:[#allocation5 + $0x258] sm:$0xff]
    %v196 = vld [vmem:[#allocation5 + $0x260] sm:$0xff]
    %v197 = vld [vmem:[#allocation5 + $0x268] sm:$0xff]
    %v198 = vld [vmem:[#allocation5 + $0x270] sm:$0xff]
    %v199 = vld [vmem:[#allocation5 + $0x278] sm:$0xff]
    %v200 = vld [vmem:[#allocation5 + $0x280] sm:$0xff]
    %v201 = vld [vmem:[#allocation5 + $0x288] sm:$0xff]
    %v202 = vld [vmem:[#allocation5 + $0x290] sm:$0xff]
    %v203 = vld [vmem:[#allocation5 + $0x298] sm:$0xff]
    %v204 = vld [vmem:[#allocation5 + $0x2a0] sm:$0xff]
    %v205 = vld [vmem:[#allocation5 + $0x2a8] sm:$0xff]
    %v206 = vld [vmem:[#allocation5 + $0x2b0] sm:$0xff]
    %v207 = vld [vmem:[#allocation5 + $0x2b8] sm:$0xff]
    %v208 = vld [vmem:[#allocation5 + $0x2c0] sm:$0xff]
    %v209 = vld [vmem:[#allocation5 + $0x2c8] sm:$0xff]
    %v210 = vld [vmem:[#allocation5 + $0x2d0] sm:$0xff]
    %v211 = vld [vmem:[#allocation5 + $0x2d8] sm:$0xff]
    %v212 = vld [vmem:[#allocation5 + $0x2e0] sm:$0xff]
    %v213 = vld [vmem:[#allocation5 + $0x2e8] sm:$0xff]
    %v214 = vld [vmem:[#allocation5 + $0x2f0] sm:$0xff]
    %v215 = vld [vmem:[#allocation5 + $0x2f8] sm:$0xff]
    %v216 = vld [vmem:[#allocation5 + $0x300] sm:$0xff]
    %v217 = vld [vmem:[#allocation5 + $0x308] sm:$0xff]
    %v218 = vld [vmem:[#allocation5 + $0x310] sm:$0xff]
    %v219 = vld [vmem:[#allocation5 + $0x318] sm:$0xff]
    %v220 = vld [vmem:[#allocation5 + $0x320] sm:$0xff]
    %v221 = vld [vmem:[#allocation5 + $0x328] sm:$0xff]
    %v222 = vld [vmem:[#allocation5 + $0x330] sm:$0xff]
    %v223 = vld [vmem:[#allocation5 + $0x338] sm:$0xff]
    %v224 = vld [vmem:[#allocation5 + $0x340] sm:$0xff]
    %v225 = vld [vmem:[#allocation5 + $0x348] sm:$0xff]
    %v226 = vld [vmem:[#allocation5 + $0x350] sm:$0xff]
    %v227 = vld [vmem:[#allocation5 + $0x358] sm:$0xff]
    %v228 = vld [vmem:[#allocation5 + $0x360] sm:$0xff]
    %v229 = vld [vmem:[#allocation5 + $0x368] sm:$0xff]
    %v230 = vld [vmem:[#allocation5 + $0x370] sm:$0xff]
    %v231 = vld [vmem:[#allocation5 + $0x378] sm:$0xff]
    %v232 = vld [vmem:[#allocation5 + $0x380] sm:$0xff]
    %v233 = vld [vmem:[#allocation5 + $0x388] sm:$0xff]
    %v234 = vld [vmem:[#allocation5 + $0x390] sm:$0xff]
    %v235 = vld [vmem:[#allocation5 + $0x398] sm:$0xff]
    %v236 = vld [vmem:[#allocation5 + $0x3a0] sm:$0xff]
    %v237 = vld [vmem:[#allocation5 + $0x3a8] sm:$0xff]
    %v238 = vld [vmem:[#allocation5 + $0x3b0] sm:$0xff]
    %v239 = vld [vmem:[#allocation5 + $0x3b8] sm:$0xff]
    %v240 = vld [vmem:[#allocation5 + $0x3c0] sm:$0xff]
    %v241 = vld [vmem:[#allocation5 + $0x3c8] sm:$0xff]
    %v242 = vld [vmem:[#allocation5 + $0x3d0] sm:$0xff]
    %v243 = vld [vmem:[#allocation5 + $0x3d8] sm:$0xff]
    %v244 = vld [vmem:[#allocation5 + $0x3e0] sm:$0xff]
    %v245 = vld [vmem:[#allocation5 + $0x3e8] sm:$0xff]
    %v246 = vld [vmem:[#allocation5 + $0x3f0] sm:$0xff]
    %v247 = vld [vmem:[#allocation5 + $0x3f8] sm:$0xff]
    %v248 = vld [vmem:[#allocation5 + $0x400] sm:$0xff]
    %v249 = vld [vmem:[#allocation5 + $0x408] sm:$0xff]
    %v250 = vld [vmem:[#allocation5 + $0x410] sm:$0xff]
    %v251 = vld [vmem:[#allocation5 + $0x418] sm:$0xff]
    %v252 = vld [vmem:[#allocation5 + $0x420] sm:$0xff]
    %v253 = vld [vmem:[#allocation5 + $0x428] sm:$0xff]
    %v254 = vld [vmem:[#allocation5 + $0x430] sm:$0xff]
    %v255 = vld [vmem:[#allocation5 + $0x438] sm:$0xff]
    %v256 = vld [vmem:[#allocation5 + $0x440] sm:$0xff]
    %v257 = vld [vmem:[#allocation5 + $0x448] sm:$0xff]
    %v258 = vld [vmem:[#allocation5 + $0x450] sm:$0xff]
    %v259 = vld [vmem:[#allocation5 + $0x458] sm:$0xff]
    %v260 = vld [vmem:[#allocation5 + $0x460] sm:$0xff]
    %v261 = vld [vmem:[#allocation5 + $0x468] sm:$0xff]
    %v262 = vld [vmem:[#allocation5 + $0x470] sm:$0xff]
    %v263 = vld [vmem:[#allocation5 + $0x478] sm:$0xff]
    %v264 = vld [vmem:[#allocation5 + $0x480] sm:$0xff]
    %v265 = vld [vmem:[#allocation5 + $0x488] sm:$0xff]
    %v266 = vld [vmem:[#allocation5 + $0x490] sm:$0xff]
    %v267 = vld [vmem:[#allocation5 + $0x498] sm:$0xff]
    %v268 = vld [vmem:[#allocation5 + $0x4a0] sm:$0xff]
    %v269 = vld [vmem:[#allocation5 + $0x4a8] sm:$0xff]
    %v270 = vld [vmem:[#allocation5 + $0x4b0] sm:$0xff]
    %v271 = vld [vmem:[#allocation5 + $0x4b8] sm:$0xff]
    %v272 = vld [vmem:[#allocation5 + $0x4c0] sm:$0xff]
    %v273 = vld [vmem:[#allocation5 + $0x4c8] sm:$0xff]
    %v274 = vld [vmem:[#allocation5 + $0x4d0] sm:$0xff]
    %v275 = vld [vmem:[#allocation5 + $0x4d8] sm:$0xff]
    %v276 = vld [vmem:[#allocation5 + $0x4e0] sm:$0xff]
    %v277 = vld [vmem:[#allocation5 + $0x4e8] sm:$0xff]
    %v278 = vld [vmem:[#allocation5 + $0x4f0] sm:$0xff]
    %v279 = vld [vmem:[#allocation5 + $0x4f8] sm:$0xff]
    %v280 = vld [vmem:[#allocation5 + $0x500] sm:$0xff]
    %v281 = vld [vmem:[#allocation5 + $0x508] sm:$0xff]
    %v282 = vld [vmem:[#allocation5 + $0x510] sm:$0xff]
    %v283 = vld [vmem:[#allocation5 + $0x518] sm:$0xff]
    %v284 = vld [vmem:[#allocation5 + $0x520] sm:$0xff]
    %v285 = vld [vmem:[#allocation5 + $0x528] sm:$0xff]
    %v286 = vld [vmem:[#allocation5 + $0x530] sm:$0xff]
    %v287 = vld [vmem:[#allocation5 + $0x538] sm:$0xff]
    %v288 = vld [vmem:[#allocation5 + $0x540] sm:$0xff]
    %v289 = vld [vmem:[#allocation5 + $0x548] sm:$0xff]
    %v290 = vld [vmem:[#allocation5 + $0x550] sm:$0xff]
    %v291 = vld [vmem:[#allocation5 + $0x558] sm:$0xff]
    %v292 = vld [vmem:[#allocation5 + $0x560] sm:$0xff]
    %v293 = vld [vmem:[#allocation5 + $0x568] sm:$0xff]
    %v294 = vld [vmem:[#allocation5 + $0x570] sm:$0xff]
    %v295 = vld [vmem:[#allocation5 + $0x578] sm:$0xff]
    %v296 = vld [vmem:[#allocation5 + $0x580] sm:$0xff]
    %v297 = vld [vmem:[#allocation5 + $0x588] sm:$0xff]
    %v298 = vld [vmem:[#allocation5 + $0x590] sm:$0xff]
    %v299 = vld [vmem:[#allocation5 + $0x598] sm:$0xff]
    %v300 = vld [vmem:[#allocation5 + $0x5a0] sm:$0xff]
    %v301 = vld [vmem:[#allocation5 + $0x5a8] sm:$0xff]
    %v302 = vld [vmem:[#allocation5 + $0x5b0] sm:$0xff]
    %v303 = vld [vmem:[#allocation5 + $0x5b8] sm:$0xff]
    %v304 = vld [vmem:[#allocation5 + $0x5c0] sm:$0xff]
    %v305 = vld [vmem:[#allocation5 + $0x5c8] sm:$0xff]
    %v306 = vld [vmem:[#allocation5 + $0x5d0] sm:$0xff]
    %v307 = vld [vmem:[#allocation5 + $0x5d8] sm:$0xff]
    %v308 = vld [vmem:[#allocation5 + $0x5e0] sm:$0xff]
    %v309 = vld [vmem:[#allocation5 + $0x5e8] sm:$0xff]
    %v310 = vld [vmem:[#allocation5 + $0x5f0] sm:$0xff]
    %v311 = vld [vmem:[#allocation5 + $0x5f8] sm:$0xff]
    %v312 = vld [vmem:[#allocation5 + $0x600] sm:$0xff]
    %v313 = vld [vmem:[#allocation5 + $0x608] sm:$0xff]
    %v314 = vld [vmem:[#allocation5 + $0x610] sm:$0xff]
    %v315 = vld [vmem:[#allocation5 + $0x618] sm:$0xff]
    %v316 = vld [vmem:[#allocation5 + $0x620] sm:$0xff]
    %v317 = vld [vmem:[#allocation5 + $0x628] sm:$0xff]
    %v318 = vld [vmem:[#allocation5 + $0x630] sm:$0xff]
    %v319 = vld [vmem:[#allocation5 + $0x638] sm:$0xff]
    %v320 = vld [vmem:[#allocation5 + $0x640] sm:$0xff]
    %v321 = vld [vmem:[#allocation5 + $0x648] sm:$0xff]
    %v322 = vld [vmem:[#allocation5 + $0x650] sm:$0xff]
    %v323 = vld [vmem:[#allocation5 + $0x658] sm:$0xff]
    %v324 = vld [vmem:[#allocation5 + $0x660] sm:$0xff]
    %v325 = vld [vmem:[#allocation5 + $0x668] sm:$0xff]
    %v326 = vld [vmem:[#allocation5 + $0x670] sm:$0xff]
    %v327 = vld [vmem:[#allocation5 + $0x678] sm:$0xff]
    %v328 = vld [vmem:[#allocation5 + $0x680] sm:$0xff]
    %v329 = vld [vmem:[#allocation5 + $0x688] sm:$0xff]
    %v330 = vld [vmem:[#allocation5 + $0x690] sm:$0xff]
    %v331 = vld [vmem:[#allocation5 + $0x698] sm:$0xff]
    %v332 = vld [vmem:[#allocation5 + $0x6a0] sm:$0xff]
    %v333 = vld [vmem:[#allocation5 + $0x6a8] sm:$0xff]
    %v334 = vld [vmem:[#allocation5 + $0x6b0] sm:$0xff]
    %v335 = vld [vmem:[#allocation5 + $0x6b8] sm:$0xff]
    %v336 = vld [vmem:[#allocation5 + $0x6c0] sm:$0xff]
    %v337 = vld [vmem:[#allocation5 + $0x6c8] sm:$0xff]
    %v338 = vld [vmem:[#allocation5 + $0x6d0] sm:$0xff]
    %v339 = vld [vmem:[#allocation5 + $0x6d8] sm:$0xff]
    %v340 = vld [vmem:[#allocation5 + $0x6e0] sm:$0xff]
    %v341 = vld [vmem:[#allocation5 + $0x6e8] sm:$0xff]
    %v342 = vld [vmem:[#allocation5 + $0x6f0] sm:$0xff]
    %v343 = vld [vmem:[#allocation5 + $0x6f8] sm:$0xff]
    %v344 = vld [vmem:[#allocation5 + $0x700] sm:$0xff]
    %v345 = vld [vmem:[#allocation5 + $0x708] sm:$0xff]
    %v346 = vld [vmem:[#allocation5 + $0x710] sm:$0xff]
    %v347 = vld [vmem:[#allocation5 + $0x718] sm:$0xff]
    %v348 = vld [vmem:[#allocation5 + $0x720] sm:$0xff]
    %v349 = vld [vmem:[#allocation5 + $0x728] sm:$0xff]
    %v350 = vld [vmem:[#allocation5 + $0x730] sm:$0xff]
    %v351 = vld [vmem:[#allocation5 + $0x738] sm:$0xff]
    %v352 = vld [vmem:[#allocation5 + $0x740] sm:$0xff]
    %v353 = vld [vmem:[#allocation5 + $0x748] sm:$0xff]
    %v354 = vld [vmem:[#allocation5 + $0x750] sm:$0xff]
    %v355 = vld [vmem:[#allocation5 + $0x758] sm:$0xff]
    %v356 = vld [vmem:[#allocation5 + $0x760] sm:$0xff]
    %v357 = vld [vmem:[#allocation5 + $0x768] sm:$0xff]
    %v358 = vld [vmem:[#allocation5 + $0x770] sm:$0xff]
    %v359 = vld [vmem:[#allocation5 + $0x778] sm:$0xff]
    %v360 = vld [vmem:[#allocation5 + $0x780] sm:$0xff]
    %v361 = vld [vmem:[#allocation5 + $0x788] sm:$0xff]
    %v362 = vld [vmem:[#allocation5 + $0x790] sm:$0xff]
    %v363 = vld [vmem:[#allocation5 + $0x798] sm:$0xff]
    %v364 = vld [vmem:[#allocation5 + $0x7a0] sm:$0xff]
    %v365 = vld [vmem:[#allocation5 + $0x7a8] sm:$0xff]
    %v366 = vld [vmem:[#allocation5 + $0x7b0] sm:$0xff]
    %v367 = vld [vmem:[#allocation5 + $0x7b8] sm:$0xff]
    %v368 = vld [vmem:[#allocation5 + $0x7c0] sm:$0xff]
    %v369 = vld [vmem:[#allocation5 + $0x7c8] sm:$0xff]
    %v370 = vld [vmem:[#allocation5 + $0x7d0] sm:$0xff]
    %v371 = vld [vmem:[#allocation5 + $0x7d8] sm:$0xff]
    %v372 = vld [vmem:[#allocation5 + $0x7e0] sm:$0xff]
    %v373 = vld [vmem:[#allocation5 + $0x7e8] sm:$0xff]
    %v374 = vld [vmem:[#allocation5 + $0x7f0] sm:$0xff]
    %v375 = vld [vmem:[#allocation5 + $0x7f8] sm:$0xff]
    %v376 = vld [vmem:[#allocation7] sm:$0xff]
    %v378 = vlaneseq
    %v379 = vshrl.u32 %v378, 7
    %v380 = vsub.s32 0, %v379
    %v381 = vrot.slane %v376, %v380
    %v382 = vlaneseq
    %v383 = vshrl.u32 %v382, 7
    %v384 = vsub.s32 1, %v383
    %v385 = vrot.slane %v376, %v384
    %v386 = vlaneseq
    %v387 = vshrl.u32 %v386, 7
    %v388 = vsub.s32 2, %v387
    %v389 = vrot.slane %v376, %v388
    %v390 = vlaneseq
    %v391 = vshrl.u32 %v390, 7
    %v392 = vsub.s32 3, %v391
    %v393 = vrot.slane %v376, %v392
    %v394 = vlaneseq
    %v395 = vshrl.u32 %v394, 7
    %v396 = vsub.s32 4, %v395
    %v397 = vrot.slane %v376, %v396
    %v398 = vlaneseq
    %v399 = vshrl.u32 %v398, 7
    %v400 = vsub.s32 5, %v399
    %v401 = vrot.slane %v376, %v400
    %v402 = vlaneseq
    %v403 = vshrl.u32 %v402, 7
    %v404 = vsub.s32 6, %v403
    %v405 = vrot.slane %v376, %v404
    %v406 = vlaneseq
    %v407 = vshrl.u32 %v406, 7
    %v408 = vsub.s32 7, %v407
    %v409 = vrot.slane %v376, %v408
    %v420 = vunpack.c.l.b16 %v118
    %v421 = vunpack.c.h.b16 %v118
    %v422 = vunpack.c.l.b16 %v119
    %v423 = vunpack.c.h.b16 %v119
    %v424 = vpack.c.b16 %v420, %v420
    %v425 = vpack.c.b16 %v421, %v421
    %v426 = vpack.c.b16 %v422, %v422
    %v427 = vpack.c.b16 %v423, %v423
    %v688 = vunpack.c.l.b16 %v120
    %v689 = vunpack.c.h.b16 %v120
    %v690 = vunpack.c.l.b16 %v121
    %v691 = vunpack.c.h.b16 %v121
    %v692 = vunpack.c.l.b16 %v122
    %v693 = vunpack.c.h.b16 %v122
    %v694 = vunpack.c.l.b16 %v123
    %v695 = vunpack.c.h.b16 %v123
    %v696 = vunpack.c.l.b16 %v124
    %v697 = vunpack.c.h.b16 %v124
    %v698 = vunpack.c.l.b16 %v125
    %v699 = vunpack.c.h.b16 %v125
    %v700 = vunpack.c.l.b16 %v126
    %v701 = vunpack.c.h.b16 %v126
    %v702 = vunpack.c.l.b16 %v127
    %v703 = vunpack.c.h.b16 %v127
    %v704 = vunpack.c.l.b16 %v128
    %v705 = vunpack.c.h.b16 %v128
    %v706 = vunpack.c.l.b16 %v129
    %v707 = vunpack.c.h.b16 %v129
    %v708 = vunpack.c.l.b16 %v130
    %v709 = vunpack.c.h.b16 %v130
    %v710 = vunpack.c.l.b16 %v131
    %v711 = vunpack.c.h.b16 %v131
    %v712 = vunpack.c.l.b16 %v132
    %v713 = vunpack.c.h.b16 %v132
    %v714 = vunpack.c.l.b16 %v133
    %v715 = vunpack.c.h.b16 %v133
    %v716 = vunpack.c.l.b16 %v134
    %v717 = vunpack.c.h.b16 %v134
    %v718 = vunpack.c.l.b16 %v135
    %v719 = vunpack.c.h.b16 %v135
    %v720 = vunpack.c.l.b16 %v136
    %v721 = vunpack.c.h.b16 %v136
    %v722 = vunpack.c.l.b16 %v137
    %v723 = vunpack.c.h.b16 %v137
    %v724 = vunpack.c.l.b16 %v138
    %v725 = vunpack.c.h.b16 %v138
    %v726 = vunpack.c.l.b16 %v139
    %v727 = vunpack.c.h.b16 %v139
    %v728 = vunpack.c.l.b16 %v140
    %v729 = vunpack.c.h.b16 %v140
    %v730 = vunpack.c.l.b16 %v141
    %v731 = vunpack.c.h.b16 %v141
    %v732 = vunpack.c.l.b16 %v142
    %v733 = vunpack.c.h.b16 %v142
    %v734 = vunpack.c.l.b16 %v143
    %v735 = vunpack.c.h.b16 %v143
    %v736 = vunpack.c.l.b16 %v144
    %v737 = vunpack.c.h.b16 %v144
    %v738 = vunpack.c.l.b16 %v145
    %v739 = vunpack.c.h.b16 %v145
    %v740 = vunpack.c.l.b16 %v146
    %v741 = vunpack.c.h.b16 %v146
    %v742 = vunpack.c.l.b16 %v147
    %v743 = vunpack.c.h.b16 %v147
    %v744 = vunpack.c.l.b16 %v148
    %v745 = vunpack.c.h.b16 %v148
    %v746 = vunpack.c.l.b16 %v149
    %v747 = vunpack.c.h.b16 %v149
    %v748 = vunpack.c.l.b16 %v150
    %v749 = vunpack.c.h.b16 %v150
    %v750 = vunpack.c.l.b16 %v151
    %v751 = vunpack.c.h.b16 %v151
    %v752 = vunpack.c.l.b16 %v152
    %v753 = vunpack.c.h.b16 %v152
    %v754 = vunpack.c.l.b16 %v153
    %v755 = vunpack.c.h.b16 %v153
    %v756 = vunpack.c.l.b16 %v154
    %v757 = vunpack.c.h.b16 %v154
    %v758 = vunpack.c.l.b16 %v155
    %v759 = vunpack.c.h.b16 %v155
    %v760 = vunpack.c.l.b16 %v156
    %v761 = vunpack.c.h.b16 %v156
    %v762 = vunpack.c.l.b16 %v157
    %v763 = vunpack.c.h.b16 %v157
    %v764 = vunpack.c.l.b16 %v158
    %v765 = vunpack.c.h.b16 %v158
    %v766 = vunpack.c.l.b16 %v159
    %v767 = vunpack.c.h.b16 %v159
    %v768 = vunpack.c.l.b16 %v160
    %v769 = vunpack.c.h.b16 %v160
    %v770 = vunpack.c.l.b16 %v161
    %v771 = vunpack.c.h.b16 %v161
    %v772 = vunpack.c.l.b16 %v162
    %v773 = vunpack.c.h.b16 %v162
    %v774 = vunpack.c.l.b16 %v163
    %v775 = vunpack.c.h.b16 %v163
    %v776 = vunpack.c.l.b16 %v164
    %v777 = vunpack.c.h.b16 %v164
    %v778 = vunpack.c.l.b16 %v165
    %v779 = vunpack.c.h.b16 %v165
    %v780 = vunpack.c.l.b16 %v166
    %v781 = vunpack.c.h.b16 %v166
    %v782 = vunpack.c.l.b16 %v167
    %v783 = vunpack.c.h.b16 %v167
    %v784 = vunpack.c.l.b16 %v168
    %v785 = vunpack.c.h.b16 %v168
    %v786 = vunpack.c.l.b16 %v169
    %v787 = vunpack.c.h.b16 %v169
    %v788 = vunpack.c.l.b16 %v170
    %v789 = vunpack.c.h.b16 %v170
    %v790 = vunpack.c.l.b16 %v171
    %v791 = vunpack.c.h.b16 %v171
    %v792 = vunpack.c.l.b16 %v172
    %v793 = vunpack.c.h.b16 %v172
    %v794 = vunpack.c.l.b16 %v173
    %v795 = vunpack.c.h.b16 %v173
    %v796 = vunpack.c.l.b16 %v174
    %v797 = vunpack.c.h.b16 %v174
    %v798 = vunpack.c.l.b16 %v175
    %v799 = vunpack.c.h.b16 %v175
    %v800 = vunpack.c.l.b16 %v176
    %v801 = vunpack.c.h.b16 %v176
    %v802 = vunpack.c.l.b16 %v177
    %v803 = vunpack.c.h.b16 %v177
    %v804 = vunpack.c.l.b16 %v178
    %v805 = vunpack.c.h.b16 %v178
    %v806 = vunpack.c.l.b16 %v179
    %v807 = vunpack.c.h.b16 %v179
    %v808 = vunpack.c.l.b16 %v180
    %v809 = vunpack.c.h.b16 %v180
    %v810 = vunpack.c.l.b16 %v181
    %v811 = vunpack.c.h.b16 %v181
    %v812 = vunpack.c.l.b16 %v182
    %v813 = vunpack.c.h.b16 %v182
    %v814 = vunpack.c.l.b16 %v183
    %v815 = vunpack.c.h.b16 %v183
    %v816 = vunpack.c.l.b16 %v184
    %v817 = vunpack.c.h.b16 %v184
    %v818 = vunpack.c.l.b16 %v185
    %v819 = vunpack.c.h.b16 %v185
    %v820 = vunpack.c.l.b16 %v186
    %v821 = vunpack.c.h.b16 %v186
    %v822 = vunpack.c.l.b16 %v187
    %v823 = vunpack.c.h.b16 %v187
    %v824 = vunpack.c.l.b16 %v188
    %v825 = vunpack.c.h.b16 %v188
    %v826 = vunpack.c.l.b16 %v189
    %v827 = vunpack.c.h.b16 %v189
    %v828 = vunpack.c.l.b16 %v190
    %v829 = vunpack.c.h.b16 %v190
    %v830 = vunpack.c.l.b16 %v191
    %v831 = vunpack.c.h.b16 %v191
    %v832 = vunpack.c.l.b16 %v192
    %v833 = vunpack.c.h.b16 %v192
    %v834 = vunpack.c.l.b16 %v193
    %v835 = vunpack.c.h.b16 %v193
    %v836 = vunpack.c.l.b16 %v194
    %v837 = vunpack.c.h.b16 %v194
    %v838 = vunpack.c.l.b16 %v195
    %v839 = vunpack.c.h.b16 %v195
    %v840 = vunpack.c.l.b16 %v196
    %v841 = vunpack.c.h.b16 %v196
    %v842 = vunpack.c.l.b16 %v197
    %v843 = vunpack.c.h.b16 %v197
    %v844 = vunpack.c.l.b16 %v198
    %v845 = vunpack.c.h.b16 %v198
    %v846 = vunpack.c.l.b16 %v199
    %v847 = vunpack.c.h.b16 %v199
    %v848 = vunpack.c.l.b16 %v200
    %v849 = vunpack.c.h.b16 %v200
    %v850 = vunpack.c.l.b16 %v201
    %v851 = vunpack.c.h.b16 %v201
    %v852 = vunpack.c.l.b16 %v202
    %v853 = vunpack.c.h.b16 %v202
    %v854 = vunpack.c.l.b16 %v203
    %v855 = vunpack.c.h.b16 %v203
    %v856 = vunpack.c.l.b16 %v204
    %v857 = vunpack.c.h.b16 %v204
    %v858 = vunpack.c.l.b16 %v205
    %v859 = vunpack.c.h.b16 %v205
    %v860 = vunpack.c.l.b16 %v206
    %v861 = vunpack.c.h.b16 %v206
    %v862 = vunpack.c.l.b16 %v207
    %v863 = vunpack.c.h.b16 %v207
    %v864 = vunpack.c.l.b16 %v208
    %v865 = vunpack.c.h.b16 %v208
    %v866 = vunpack.c.l.b16 %v209
    %v867 = vunpack.c.h.b16 %v209
    %v868 = vunpack.c.l.b16 %v210
    %v869 = vunpack.c.h.b16 %v210
    %v870 = vunpack.c.l.b16 %v211
    %v871 = vunpack.c.h.b16 %v211
    %v872 = vunpack.c.l.b16 %v212
    %v873 = vunpack.c.h.b16 %v212
    %v874 = vunpack.c.l.b16 %v213
    %v875 = vunpack.c.h.b16 %v213
    %v876 = vunpack.c.l.b16 %v214
    %v877 = vunpack.c.h.b16 %v214
    %v878 = vunpack.c.l.b16 %v215
    %v879 = vunpack.c.h.b16 %v215
    %v880 = vunpack.c.l.b16 %v216
    %v881 = vunpack.c.h.b16 %v216
    %v882 = vunpack.c.l.b16 %v217
    %v883 = vunpack.c.h.b16 %v217
    %v884 = vunpack.c.l.b16 %v218
    %v885 = vunpack.c.h.b16 %v218
    %v886 = vunpack.c.l.b16 %v219
    %v887 = vunpack.c.h.b16 %v219
    %v888 = vunpack.c.l.b16 %v220
    %v889 = vunpack.c.h.b16 %v220
    %v890 = vunpack.c.l.b16 %v221
    %v891 = vunpack.c.h.b16 %v221
    %v892 = vunpack.c.l.b16 %v222
    %v893 = vunpack.c.h.b16 %v222
    %v894 = vunpack.c.l.b16 %v223
    %v895 = vunpack.c.h.b16 %v223
    %v896 = vunpack.c.l.b16 %v224
    %v897 = vunpack.c.h.b16 %v224
    %v898 = vunpack.c.l.b16 %v225
    %v899 = vunpack.c.h.b16 %v225
    %v900 = vunpack.c.l.b16 %v226
    %v901 = vunpack.c.h.b16 %v226
    %v902 = vunpack.c.l.b16 %v227
    %v903 = vunpack.c.h.b16 %v227
    %v904 = vunpack.c.l.b16 %v228
    %v905 = vunpack.c.h.b16 %v228
    %v906 = vunpack.c.l.b16 %v229
    %v907 = vunpack.c.h.b16 %v229
    %v908 = vunpack.c.l.b16 %v230
    %v909 = vunpack.c.h.b16 %v230
    %v910 = vunpack.c.l.b16 %v231
    %v911 = vunpack.c.h.b16 %v231
    %v912 = vunpack.c.l.b16 %v232
    %v913 = vunpack.c.h.b16 %v232
    %v914 = vunpack.c.l.b16 %v233
    %v915 = vunpack.c.h.b16 %v233
    %v916 = vunpack.c.l.b16 %v234
    %v917 = vunpack.c.h.b16 %v234
    %v918 = vunpack.c.l.b16 %v235
    %v919 = vunpack.c.h.b16 %v235
    %v920 = vunpack.c.l.b16 %v236
    %v921 = vunpack.c.h.b16 %v236
    %v922 = vunpack.c.l.b16 %v237
    %v923 = vunpack.c.h.b16 %v237
    %v924 = vunpack.c.l.b16 %v238
    %v925 = vunpack.c.h.b16 %v238
    %v926 = vunpack.c.l.b16 %v239
    %v927 = vunpack.c.h.b16 %v239
    %v928 = vunpack.c.l.b16 %v240
    %v929 = vunpack.c.h.b16 %v240
    %v930 = vunpack.c.l.b16 %v241
    %v931 = vunpack.c.h.b16 %v241
    %v932 = vunpack.c.l.b16 %v242
    %v933 = vunpack.c.h.b16 %v242
    %v934 = vunpack.c.l.b16 %v243
    %v935 = vunpack.c.h.b16 %v243
    %v936 = vunpack.c.l.b16 %v244
    %v937 = vunpack.c.h.b16 %v244
    %v938 = vunpack.c.l.b16 %v245
    %v939 = vunpack.c.h.b16 %v245
    %v940 = vunpack.c.l.b16 %v246
    %v941 = vunpack.c.h.b16 %v246
    %v942 = vunpack.c.l.b16 %v247
    %v943 = vunpack.c.h.b16 %v247
    %v944 = vunpack.c.l.b16 %v248
    %v945 = vunpack.c.h.b16 %v248
    %v946 = vunpack.c.l.b16 %v249
    %v947 = vunpack.c.h.b16 %v249
    %v948 = vunpack.c.l.b16 %v250
    %v949 = vunpack.c.h.b16 %v250
    %v950 = vunpack.c.l.b16 %v251
    %v951 = vunpack.c.h.b16 %v251
    %v952 = vunpack.c.l.b16 %v252
    %v953 = vunpack.c.h.b16 %v252
    %v954 = vunpack.c.l.b16 %v253
    %v955 = vunpack.c.h.b16 %v253
    %v956 = vunpack.c.l.b16 %v254
    %v957 = vunpack.c.h.b16 %v254
    %v958 = vunpack.c.l.b16 %v255
    %v959 = vunpack.c.h.b16 %v255
    %v960 = vunpack.c.l.b16 %v256
    %v961 = vunpack.c.h.b16 %v256
    %v962 = vunpack.c.l.b16 %v257
    %v963 = vunpack.c.h.b16 %v257
    %v964 = vunpack.c.l.b16 %v258
    %v965 = vunpack.c.h.b16 %v258
    %v966 = vunpack.c.l.b16 %v259
    %v967 = vunpack.c.h.b16 %v259
    %v968 = vunpack.c.l.b16 %v260
    %v969 = vunpack.c.h.b16 %v260
    %v970 = vunpack.c.l.b16 %v261
    %v971 = vunpack.c.h.b16 %v261
    %v972 = vunpack.c.l.b16 %v262
    %v973 = vunpack.c.h.b16 %v262
    %v974 = vunpack.c.l.b16 %v263
    %v975 = vunpack.c.h.b16 %v263
    %v976 = vunpack.c.l.b16 %v264
    %v977 = vunpack.c.h.b16 %v264
    %v978 = vunpack.c.l.b16 %v265
    %v979 = vunpack.c.h.b16 %v265
    %v980 = vunpack.c.l.b16 %v266
    %v981 = vunpack.c.h.b16 %v266
    %v982 = vunpack.c.l.b16 %v267
    %v983 = vunpack.c.h.b16 %v267
    %v984 = vunpack.c.l.b16 %v268
    %v985 = vunpack.c.h.b16 %v268
    %v986 = vunpack.c.l.b16 %v269
    %v987 = vunpack.c.h.b16 %v269
    %v988 = vunpack.c.l.b16 %v270
    %v989 = vunpack.c.h.b16 %v270
    %v990 = vunpack.c.l.b16 %v271
    %v991 = vunpack.c.h.b16 %v271
    %v992 = vunpack.c.l.b16 %v272
    %v993 = vunpack.c.h.b16 %v272
    %v994 = vunpack.c.l.b16 %v273
    %v995 = vunpack.c.h.b16 %v273
    %v996 = vunpack.c.l.b16 %v274
    %v997 = vunpack.c.h.b16 %v274
    %v998 = vunpack.c.l.b16 %v275
    %v999 = vunpack.c.h.b16 %v275
    %v1000 = vunpack.c.l.b16 %v276
    %v1001 = vunpack.c.h.b16 %v276
    %v1002 = vunpack.c.l.b16 %v277
    %v1003 = vunpack.c.h.b16 %v277
    %v1004 = vunpack.c.l.b16 %v278
    %v1005 = vunpack.c.h.b16 %v278
    %v1006 = vunpack.c.l.b16 %v279
    %v1007 = vunpack.c.h.b16 %v279
    %v1008 = vunpack.c.l.b16 %v280
    %v1009 = vunpack.c.h.b16 %v280
    %v1010 = vunpack.c.l.b16 %v281
    %v1011 = vunpack.c.h.b16 %v281
    %v1012 = vunpack.c.l.b16 %v282
    %v1013 = vunpack.c.h.b16 %v282
    %v1014 = vunpack.c.l.b16 %v283
    %v1015 = vunpack.c.h.b16 %v283
    %v1016 = vunpack.c.l.b16 %v284
    %v1017 = vunpack.c.h.b16 %v284
    %v1018 = vunpack.c.l.b16 %v285
    %v1019 = vunpack.c.h.b16 %v285
    %v1020 = vunpack.c.l.b16 %v286
    %v1021 = vunpack.c.h.b16 %v286
    %v1022 = vunpack.c.l.b16 %v287
    %v1023 = vunpack.c.h.b16 %v287
    %v1024 = vunpack.c.l.b16 %v288
    %v1025 = vunpack.c.h.b16 %v288
    %v1026 = vunpack.c.l.b16 %v289
    %v1027 = vunpack.c.h.b16 %v289
    %v1028 = vunpack.c.l.b16 %v290
    %v1029 = vunpack.c.h.b16 %v290
    %v1030 = vunpack.c.l.b16 %v291
    %v1031 = vunpack.c.h.b16 %v291
    %v1032 = vunpack.c.l.b16 %v292
    %v1033 = vunpack.c.h.b16 %v292
    %v1034 = vunpack.c.l.b16 %v293
    %v1035 = vunpack.c.h.b16 %v293
    %v1036 = vunpack.c.l.b16 %v294
    %v1037 = vunpack.c.h.b16 %v294
    %v1038 = vunpack.c.l.b16 %v295
    %v1039 = vunpack.c.h.b16 %v295
    %v1040 = vunpack.c.l.b16 %v296
    %v1041 = vunpack.c.h.b16 %v296
    %v1042 = vunpack.c.l.b16 %v297
    %v1043 = vunpack.c.h.b16 %v297
    %v1044 = vunpack.c.l.b16 %v298
    %v1045 = vunpack.c.h.b16 %v298
    %v1046 = vunpack.c.l.b16 %v299
    %v1047 = vunpack.c.h.b16 %v299
    %v1048 = vunpack.c.l.b16 %v300
    %v1049 = vunpack.c.h.b16 %v300
    %v1050 = vunpack.c.l.b16 %v301
    %v1051 = vunpack.c.h.b16 %v301
    %v1052 = vunpack.c.l.b16 %v302
    %v1053 = vunpack.c.h.b16 %v302
    %v1054 = vunpack.c.l.b16 %v303
    %v1055 = vunpack.c.h.b16 %v303
    %v1056 = vunpack.c.l.b16 %v304
    %v1057 = vunpack.c.h.b16 %v304
    %v1058 = vunpack.c.l.b16 %v305
    %v1059 = vunpack.c.h.b16 %v305
    %v1060 = vunpack.c.l.b16 %v306
    %v1061 = vunpack.c.h.b16 %v306
    %v1062 = vunpack.c.l.b16 %v307
    %v1063 = vunpack.c.h.b16 %v307
    %v1064 = vunpack.c.l.b16 %v308
    %v1065 = vunpack.c.h.b16 %v308
    %v1066 = vunpack.c.l.b16 %v309
    %v1067 = vunpack.c.h.b16 %v309
    %v1068 = vunpack.c.l.b16 %v310
    %v1069 = vunpack.c.h.b16 %v310
    %v1070 = vunpack.c.l.b16 %v311
    %v1071 = vunpack.c.h.b16 %v311
    %v1072 = vunpack.c.l.b16 %v312
    %v1073 = vunpack.c.h.b16 %v312
    %v1074 = vunpack.c.l.b16 %v313
    %v1075 = vunpack.c.h.b16 %v313
    %v1076 = vunpack.c.l.b16 %v314
    %v1077 = vunpack.c.h.b16 %v314
    %v1078 = vunpack.c.l.b16 %v315
    %v1079 = vunpack.c.h.b16 %v315
    %v1080 = vunpack.c.l.b16 %v316
    %v1081 = vunpack.c.h.b16 %v316
    %v1082 = vunpack.c.l.b16 %v317
    %v1083 = vunpack.c.h.b16 %v317
    %v1084 = vunpack.c.l.b16 %v318
    %v1085 = vunpack.c.h.b16 %v318
    %v1086 = vunpack.c.l.b16 %v319
    %v1087 = vunpack.c.h.b16 %v319
    %v1088 = vunpack.c.l.b16 %v320
    %v1089 = vunpack.c.h.b16 %v320
    %v1090 = vunpack.c.l.b16 %v321
    %v1091 = vunpack.c.h.b16 %v321
    %v1092 = vunpack.c.l.b16 %v322
    %v1093 = vunpack.c.h.b16 %v322
    %v1094 = vunpack.c.l.b16 %v323
    %v1095 = vunpack.c.h.b16 %v323
    %v1096 = vunpack.c.l.b16 %v324
    %v1097 = vunpack.c.h.b16 %v324
    %v1098 = vunpack.c.l.b16 %v325
    %v1099 = vunpack.c.h.b16 %v325
    %v1100 = vunpack.c.l.b16 %v326
    %v1101 = vunpack.c.h.b16 %v326
    %v1102 = vunpack.c.l.b16 %v327
    %v1103 = vunpack.c.h.b16 %v327
    %v1104 = vunpack.c.l.b16 %v328
    %v1105 = vunpack.c.h.b16 %v328
    %v1106 = vunpack.c.l.b16 %v329
    %v1107 = vunpack.c.h.b16 %v329
    %v1108 = vunpack.c.l.b16 %v330
    %v1109 = vunpack.c.h.b16 %v330
    %v1110 = vunpack.c.l.b16 %v331
    %v1111 = vunpack.c.h.b16 %v331
    %v1112 = vunpack.c.l.b16 %v332
    %v1113 = vunpack.c.h.b16 %v332
    %v1114 = vunpack.c.l.b16 %v333
    %v1115 = vunpack.c.h.b16 %v333
    %v1116 = vunpack.c.l.b16 %v334
    %v1117 = vunpack.c.h.b16 %v334
    %v1118 = vunpack.c.l.b16 %v335
    %v1119 = vunpack.c.h.b16 %v335
    %v1120 = vunpack.c.l.b16 %v336
    %v1121 = vunpack.c.h.b16 %v336
    %v1122 = vunpack.c.l.b16 %v337
    %v1123 = vunpack.c.h.b16 %v337
    %v1124 = vunpack.c.l.b16 %v338
    %v1125 = vunpack.c.h.b16 %v338
    %v1126 = vunpack.c.l.b16 %v339
    %v1127 = vunpack.c.h.b16 %v339
    %v1128 = vunpack.c.l.b16 %v340
    %v1129 = vunpack.c.h.b16 %v340
    %v1130 = vunpack.c.l.b16 %v341
    %v1131 = vunpack.c.h.b16 %v341
    %v1132 = vunpack.c.l.b16 %v342
    %v1133 = vunpack.c.h.b16 %v342
    %v1134 = vunpack.c.l.b16 %v343
    %v1135 = vunpack.c.h.b16 %v343
    %v1136 = vunpack.c.l.b16 %v344
    %v1137 = vunpack.c.h.b16 %v344
    %v1138 = vunpack.c.l.b16 %v345
    %v1139 = vunpack.c.h.b16 %v345
    %v1140 = vunpack.c.l.b16 %v346
    %v1141 = vunpack.c.h.b16 %v346
    %v1142 = vunpack.c.l.b16 %v347
    %v1143 = vunpack.c.h.b16 %v347
    %v1144 = vunpack.c.l.b16 %v348
    %v1145 = vunpack.c.h.b16 %v348
    %v1146 = vunpack.c.l.b16 %v349
    %v1147 = vunpack.c.h.b16 %v349
    %v1148 = vunpack.c.l.b16 %v350
    %v1149 = vunpack.c.h.b16 %v350
    %v1150 = vunpack.c.l.b16 %v351
    %v1151 = vunpack.c.h.b16 %v351
    %v1152 = vunpack.c.l.b16 %v352
    %v1153 = vunpack.c.h.b16 %v352
    %v1154 = vunpack.c.l.b16 %v353
    %v1155 = vunpack.c.h.b16 %v353
    %v1156 = vunpack.c.l.b16 %v354
    %v1157 = vunpack.c.h.b16 %v354
    %v1158 = vunpack.c.l.b16 %v355
    %v1159 = vunpack.c.h.b16 %v355
    %v1160 = vunpack.c.l.b16 %v356
    %v1161 = vunpack.c.h.b16 %v356
    %v1162 = vunpack.c.l.b16 %v357
    %v1163 = vunpack.c.h.b16 %v357
    %v1164 = vunpack.c.l.b16 %v358
    %v1165 = vunpack.c.h.b16 %v358
    %v1166 = vunpack.c.l.b16 %v359
    %v1167 = vunpack.c.h.b16 %v359
    %v1168 = vunpack.c.l.b16 %v360
    %v1169 = vunpack.c.h.b16 %v360
    %v1170 = vunpack.c.l.b16 %v361
    %v1171 = vunpack.c.h.b16 %v361
    %v1172 = vunpack.c.l.b16 %v362
    %v1173 = vunpack.c.h.b16 %v362
    %v1174 = vunpack.c.l.b16 %v363
    %v1175 = vunpack.c.h.b16 %v363
    %v1176 = vunpack.c.l.b16 %v364
    %v1177 = vunpack.c.h.b16 %v364
    %v1178 = vunpack.c.l.b16 %v365
    %v1179 = vunpack.c.h.b16 %v365
    %v1180 = vunpack.c.l.b16 %v366
    %v1181 = vunpack.c.h.b16 %v366
    %v1182 = vunpack.c.l.b16 %v367
    %v1183 = vunpack.c.h.b16 %v367
    %v1184 = vunpack.c.l.b16 %v368
    %v1185 = vunpack.c.h.b16 %v368
    %v1186 = vunpack.c.l.b16 %v369
    %v1187 = vunpack.c.h.b16 %v369
    %v1188 = vunpack.c.l.b16 %v370
    %v1189 = vunpack.c.h.b16 %v370
    %v1190 = vunpack.c.l.b16 %v371
    %v1191 = vunpack.c.h.b16 %v371
    %v1192 = vunpack.c.l.b16 %v372
    %v1193 = vunpack.c.h.b16 %v372
    %v1194 = vunpack.c.l.b16 %v373
    %v1195 = vunpack.c.h.b16 %v373
    %v1196 = vunpack.c.l.b16 %v374
    %v1197 = vunpack.c.h.b16 %v374
    %v1198 = vunpack.c.l.b16 %v375
    %v1199 = vunpack.c.h.b16 %v375
    %v1200 = vpack.c.b16 %v696, %v688
    %v1201 = vpack.c.b16 %v697, %v689
    %v1202 = vpack.c.b16 %v698, %v690
    %v1203 = vpack.c.b16 %v699, %v691
    %v1204 = vpack.c.b16 %v700, %v692
    %v1205 = vpack.c.b16 %v701, %v693
    %v1206 = vpack.c.b16 %v702, %v694
    %v1207 = vpack.c.b16 %v703, %v695
    %v1208 = vpack.c.b16 %v712, %v704
    %v1209 = vpack.c.b16 %v713, %v705
    %v1210 = vpack.c.b16 %v714, %v706
    %v1211 = vpack.c.b16 %v715, %v707
    %v1212 = vpack.c.b16 %v716, %v708
    %v1213 = vpack.c.b16 %v717, %v709
    %v1214 = vpack.c.b16 %v718, %v710
    %v1215 = vpack.c.b16 %v719, %v711
    %v1216 = vpack.c.b16 %v728, %v720
    %v1217 = vpack.c.b16 %v729, %v721
    %v1218 = vpack.c.b16 %v730, %v722
    %v1219 = vpack.c.b16 %v731, %v723
    %v1220 = vpack.c.b16 %v732, %v724
    %v1221 = vpack.c.b16 %v733, %v725
    %v1222 = vpack.c.b16 %v734, %v726
    %v1223 = vpack.c.b16 %v735, %v727
    %v1224 = vpack.c.b16 %v744, %v736
    %v1225 = vpack.c.b16 %v745, %v737
    %v1226 = vpack.c.b16 %v746, %v738
    %v1227 = vpack.c.b16 %v747, %v739
    %v1228 = vpack.c.b16 %v748, %v740
    %v1229 = vpack.c.b16 %v749, %v741
    %v1230 = vpack.c.b16 %v750, %v742
    %v1231 = vpack.c.b16 %v751, %v743
    %v1232 = vpack.c.b16 %v760, %v752
    %v1233 = vpack.c.b16 %v761, %v753
    %v1234 = vpack.c.b16 %v762, %v754
    %v1235 = vpack.c.b16 %v763, %v755
    %v1236 = vpack.c.b16 %v764, %v756
    %v1237 = vpack.c.b16 %v765, %v757
    %v1238 = vpack.c.b16 %v766, %v758
    %v1239 = vpack.c.b16 %v767, %v759
    %v1240 = vpack.c.b16 %v776, %v768
    %v1241 = vpack.c.b16 %v777, %v769
    %v1242 = vpack.c.b16 %v778, %v770
    %v1243 = vpack.c.b16 %v779, %v771
    %v1244 = vpack.c.b16 %v780, %v772
    %v1245 = vpack.c.b16 %v781, %v773
    %v1246 = vpack.c.b16 %v782, %v774
    %v1247 = vpack.c.b16 %v783, %v775
    %v1248 = vpack.c.b16 %v792, %v784
    %v1249 = vpack.c.b16 %v793, %v785
    %v1250 = vpack.c.b16 %v794, %v786
    %v1251 = vpack.c.b16 %v795, %v787
    %v1252 = vpack.c.b16 %v796, %v788
    %v1253 = vpack.c.b16 %v797, %v789
    %v1254 = vpack.c.b16 %v798, %v790
    %v1255 = vpack.c.b16 %v799, %v791
    %v1256 = vpack.c.b16 %v808, %v800
    %v1257 = vpack.c.b16 %v809, %v801
    %v1258 = vpack.c.b16 %v810, %v802
    %v1259 = vpack.c.b16 %v811, %v803
    %v1260 = vpack.c.b16 %v812, %v804
    %v1261 = vpack.c.b16 %v813, %v805
    %v1262 = vpack.c.b16 %v814, %v806
    %v1263 = vpack.c.b16 %v815, %v807
    %v1264 = vpack.c.b16 %v824, %v816
    %v1265 = vpack.c.b16 %v825, %v817
    %v1266 = vpack.c.b16 %v826, %v818
    %v1267 = vpack.c.b16 %v827, %v819
    %v1268 = vpack.c.b16 %v828, %v820
    %v1269 = vpack.c.b16 %v829, %v821
    %v1270 = vpack.c.b16 %v830, %v822
    %v1271 = vpack.c.b16 %v831, %v823
    %v1272 = vpack.c.b16 %v840, %v832
    %v1273 = vpack.c.b16 %v841, %v833
    %v1274 = vpack.c.b16 %v842, %v834
    %v1275 = vpack.c.b16 %v843, %v835
    %v1276 = vpack.c.b16 %v844, %v836
    %v1277 = vpack.c.b16 %v845, %v837
    %v1278 = vpack.c.b16 %v846, %v838
    %v1279 = vpack.c.b16 %v847, %v839
    %v1280 = vpack.c.b16 %v856, %v848
    %v1281 = vpack.c.b16 %v857, %v849
    %v1282 = vpack.c.b16 %v858, %v850
    %v1283 = vpack.c.b16 %v859, %v851
    %v1284 = vpack.c.b16 %v860, %v852
    %v1285 = vpack.c.b16 %v861, %v853
    %v1286 = vpack.c.b16 %v862, %v854
    %v1287 = vpack.c.b16 %v863, %v855
    %v1288 = vpack.c.b16 %v872, %v864
    %v1289 = vpack.c.b16 %v873, %v865
    %v1290 = vpack.c.b16 %v874, %v866
    %v1291 = vpack.c.b16 %v875, %v867
    %v1292 = vpack.c.b16 %v876, %v868
    %v1293 = vpack.c.b16 %v877, %v869
    %v1294 = vpack.c.b16 %v878, %v870
    %v1295 = vpack.c.b16 %v879, %v871
    %v1296 = vpack.c.b16 %v888, %v880
    %v1297 = vpack.c.b16 %v889, %v881
    %v1298 = vpack.c.b16 %v890, %v882
    %v1299 = vpack.c.b16 %v891, %v883
    %v1300 = vpack.c.b16 %v892, %v884
    %v1301 = vpack.c.b16 %v893, %v885
    %v1302 = vpack.c.b16 %v894, %v886
    %v1303 = vpack.c.b16 %v895, %v887
    %v1304 = vpack.c.b16 %v904, %v896
    %v1305 = vpack.c.b16 %v905, %v897
    %v1306 = vpack.c.b16 %v906, %v898
    %v1307 = vpack.c.b16 %v907, %v899
    %v1308 = vpack.c.b16 %v908, %v900
    %v1309 = vpack.c.b16 %v909, %v901
    %v1310 = vpack.c.b16 %v910, %v902
    %v1311 = vpack.c.b16 %v911, %v903
    %v1312 = vpack.c.b16 %v920, %v912
    %v1313 = vpack.c.b16 %v921, %v913
    %v1314 = vpack.c.b16 %v922, %v914
    %v1315 = vpack.c.b16 %v923, %v915
    %v1316 = vpack.c.b16 %v924, %v916
    %v1317 = vpack.c.b16 %v925, %v917
    %v1318 = vpack.c.b16 %v926, %v918
    %v1319 = vpack.c.b16 %v927, %v919
    %v1320 = vpack.c.b16 %v936, %v928
    %v1321 = vpack.c.b16 %v937, %v929
    %v1322 = vpack.c.b16 %v938, %v930
    %v1323 = vpack.c.b16 %v939, %v931
    %v1324 = vpack.c.b16 %v940, %v932
    %v1325 = vpack.c.b16 %v941, %v933
    %v1326 = vpack.c.b16 %v942, %v934
    %v1327 = vpack.c.b16 %v943, %v935
    %v1328 = vpack.c.b16 %v952, %v944
    %v1329 = vpack.c.b16 %v953, %v945
    %v1330 = vpack.c.b16 %v954, %v946
    %v1331 = vpack.c.b16 %v955, %v947
    %v1332 = vpack.c.b16 %v956, %v948
    %v1333 = vpack.c.b16 %v957, %v949
    %v1334 = vpack.c.b16 %v958, %v950
    %v1335 = vpack.c.b16 %v959, %v951
    %v1336 = vpack.c.b16 %v968, %v960
    %v1337 = vpack.c.b16 %v969, %v961
    %v1338 = vpack.c.b16 %v970, %v962
    %v1339 = vpack.c.b16 %v971, %v963
    %v1340 = vpack.c.b16 %v972, %v964
    %v1341 = vpack.c.b16 %v973, %v965
    %v1342 = vpack.c.b16 %v974, %v966
    %v1343 = vpack.c.b16 %v975, %v967
    %v1344 = vpack.c.b16 %v984, %v976
    %v1345 = vpack.c.b16 %v985, %v977
    %v1346 = vpack.c.b16 %v986, %v978
    %v1347 = vpack.c.b16 %v987, %v979
    %v1348 = vpack.c.b16 %v988, %v980
    %v1349 = vpack.c.b16 %v989, %v981
    %v1350 = vpack.c.b16 %v990, %v982
    %v1351 = vpack.c.b16 %v991, %v983
    %v1352 = vpack.c.b16 %v1000, %v992
    %v1353 = vpack.c.b16 %v1001, %v993
    %v1354 = vpack.c.b16 %v1002, %v994
    %v1355 = vpack.c.b16 %v1003, %v995
    %v1356 = vpack.c.b16 %v1004, %v996
    %v1357 = vpack.c.b16 %v1005, %v997
    %v1358 = vpack.c.b16 %v1006, %v998
    %v1359 = vpack.c.b16 %v1007, %v999
    %v1360 = vpack.c.b16 %v1016, %v1008
    %v1361 = vpack.c.b16 %v1017, %v1009
    %v1362 = vpack.c.b16 %v1018, %v1010
    %v1363 = vpack.c.b16 %v1019, %v1011
    %v1364 = vpack.c.b16 %v1020, %v1012
    %v1365 = vpack.c.b16 %v1021, %v1013
    %v1366 = vpack.c.b16 %v1022, %v1014
    %v1367 = vpack.c.b16 %v1023, %v1015
    %v1368 = vpack.c.b16 %v1032, %v1024
    %v1369 = vpack.c.b16 %v1033, %v1025
    %v1370 = vpack.c.b16 %v1034, %v1026
    %v1371 = vpack.c.b16 %v1035, %v1027
    %v1372 = vpack.c.b16 %v1036, %v1028
    %v1373 = vpack.c.b16 %v1037, %v1029
    %v1374 = vpack.c.b16 %v1038, %v1030
    %v1375 = vpack.c.b16 %v1039, %v1031
    %v1376 = vpack.c.b16 %v1048, %v1040
    %v1377 = vpack.c.b16 %v1049, %v1041
    %v1378 = vpack.c.b16 %v1050, %v1042
    %v1379 = vpack.c.b16 %v1051, %v1043
    %v1380 = vpack.c.b16 %v1052, %v1044
    %v1381 = vpack.c.b16 %v1053, %v1045
    %v1382 = vpack.c.b16 %v1054, %v1046
    %v1383 = vpack.c.b16 %v1055, %v1047
    %v1384 = vpack.c.b16 %v1064, %v1056
    %v1385 = vpack.c.b16 %v1065, %v1057
    %v1386 = vpack.c.b16 %v1066, %v1058
    %v1387 = vpack.c.b16 %v1067, %v1059
    %v1388 = vpack.c.b16 %v1068, %v1060
    %v1389 = vpack.c.b16 %v1069, %v1061
    %v1390 = vpack.c.b16 %v1070, %v1062
    %v1391 = vpack.c.b16 %v1071, %v1063
    %v1392 = vpack.c.b16 %v1080, %v1072
    %v1393 = vpack.c.b16 %v1081, %v1073
    %v1394 = vpack.c.b16 %v1082, %v1074
    %v1395 = vpack.c.b16 %v1083, %v1075
    %v1396 = vpack.c.b16 %v1084, %v1076
    %v1397 = vpack.c.b16 %v1085, %v1077
    %v1398 = vpack.c.b16 %v1086, %v1078
    %v1399 = vpack.c.b16 %v1087, %v1079
    %v1400 = vpack.c.b16 %v1096, %v1088
    %v1401 = vpack.c.b16 %v1097, %v1089
    %v1402 = vpack.c.b16 %v1098, %v1090
    %v1403 = vpack.c.b16 %v1099, %v1091
    %v1404 = vpack.c.b16 %v1100, %v1092
    %v1405 = vpack.c.b16 %v1101, %v1093
    %v1406 = vpack.c.b16 %v1102, %v1094
    %v1407 = vpack.c.b16 %v1103, %v1095
    %v1408 = vpack.c.b16 %v1112, %v1104
    %v1409 = vpack.c.b16 %v1113, %v1105
    %v1410 = vpack.c.b16 %v1114, %v1106
    %v1411 = vpack.c.b16 %v1115, %v1107
    %v1412 = vpack.c.b16 %v1116, %v1108
    %v1413 = vpack.c.b16 %v1117, %v1109
    %v1414 = vpack.c.b16 %v1118, %v1110
    %v1415 = vpack.c.b16 %v1119, %v1111
    %v1416 = vpack.c.b16 %v1128, %v1120
    %v1417 = vpack.c.b16 %v1129, %v1121
    %v1418 = vpack.c.b16 %v1130, %v1122
    %v1419 = vpack.c.b16 %v1131, %v1123
    %v1420 = vpack.c.b16 %v1132, %v1124
    %v1421 = vpack.c.b16 %v1133, %v1125
    %v1422 = vpack.c.b16 %v1134, %v1126
    %v1423 = vpack.c.b16 %v1135, %v1127
    %v1424 = vpack.c.b16 %v1144, %v1136
    %v1425 = vpack.c.b16 %v1145, %v1137
    %v1426 = vpack.c.b16 %v1146, %v1138
    %v1427 = vpack.c.b16 %v1147, %v1139
    %v1428 = vpack.c.b16 %v1148, %v1140
    %v1429 = vpack.c.b16 %v1149, %v1141
    %v1430 = vpack.c.b16 %v1150, %v1142
    %v1431 = vpack.c.b16 %v1151, %v1143
    %v1432 = vpack.c.b16 %v1160, %v1152
    %v1433 = vpack.c.b16 %v1161, %v1153
    %v1434 = vpack.c.b16 %v1162, %v1154
    %v1435 = vpack.c.b16 %v1163, %v1155
    %v1436 = vpack.c.b16 %v1164, %v1156
    %v1437 = vpack.c.b16 %v1165, %v1157
    %v1438 = vpack.c.b16 %v1166, %v1158
    %v1439 = vpack.c.b16 %v1167, %v1159
    %v1440 = vpack.c.b16 %v1176, %v1168
    %v1441 = vpack.c.b16 %v1177, %v1169
    %v1442 = vpack.c.b16 %v1178, %v1170
    %v1443 = vpack.c.b16 %v1179, %v1171
    %v1444 = vpack.c.b16 %v1180, %v1172
    %v1445 = vpack.c.b16 %v1181, %v1173
    %v1446 = vpack.c.b16 %v1182, %v1174
    %v1447 = vpack.c.b16 %v1183, %v1175
    %v1448 = vpack.c.b16 %v1192, %v1184
    %v1449 = vpack.c.b16 %v1193, %v1185
    %v1450 = vpack.c.b16 %v1194, %v1186
    %v1451 = vpack.c.b16 %v1195, %v1187
    %v1452 = vpack.c.b16 %v1196, %v1188
    %v1453 = vpack.c.b16 %v1197, %v1189
    %v1454 = vpack.c.b16 %v1198, %v1190
    %v1455 = vpack.c.b16 %v1199, %v1191
    %1712 = vmatprep.subr.bf16.mxu0 %v1257
    %1713 = vmatpush1.bf16.msra.mxu0 %v1256
    %1714 = vmatprep.subr.bf16.mxu0 %v1249
    %1715 = vmatpush1.bf16.msra.mxu0 %v1248
    %1716 = vmatprep.subr.bf16.mxu0 %v1241
    %1717 = vmatpush1.bf16.msra.mxu0 %v1240
    %1718 = vmatprep.subr.bf16.mxu0 %v1233
    %1719 = vmatpush1.bf16.msra.mxu0 %v1232
    %1720 = vmatprep.subr.bf16.mxu0 %v1225
    %1721 = vmatpush1.bf16.msra.mxu0 %v1224
    %1722 = vmatprep.subr.bf16.mxu0 %v1217
    %1723 = vmatpush1.bf16.msra.mxu0 %v1216
    %1724 = vmatprep.subr.bf16.mxu0 %v1209
    %1725 = vmatpush1.bf16.msra.mxu0 %v1208
    %1726 = vmatprep.subr.bf16.mxu0 %v1201
    %1727 = vmatpush1.bf16.msra.mxu0 %v1200
    %1728 = vmatprep.subr.bf16.mxu0 %v1321
    %1729 = vmatpush2.bf16.msra.mxu0 %v1320
    %1730 = vmatprep.subr.bf16.mxu0 %v1313
    %1731 = vmatpush2.bf16.msra.mxu0 %v1312
    %1732 = vmatprep.subr.bf16.mxu0 %v1305
    %1733 = vmatpush2.bf16.msra.mxu0 %v1304
    %1734 = vmatprep.subr.bf16.mxu0 %v1297
    %1735 = vmatpush2.bf16.msra.mxu0 %v1296
    %1736 = vmatprep.subr.bf16.mxu0 %v1289
    %1737 = vmatpush2.bf16.msra.mxu0 %v1288
    %1738 = vmatprep.subr.bf16.mxu0 %v1281
    %1739 = vmatpush2.bf16.msra.mxu0 %v1280
    %1740 = vmatprep.subr.bf16.mxu0 %v1273
    %1741 = vmatpush2.bf16.msra.mxu0 %v1272
    %1742 = vmatprep.subr.bf16.mxu0 %v1265
    %1743 = vmatpush2.bf16.msra.mxu0 %v1264
    %1744 = vmatprep.mubr.bf16.mxu0 %v425
    %1745 = vmatmul.mubr.bf16.gmra.mxu0 %v424
    %v1746 = vpop.f32.mrf.mxu0
    %v1747 = vadd.f32 %v381, %v1746
    %v1748 = vpop.f32.mrf.mxu0
    %v1749 = vadd.f32 %v385, %v1748
    %v1750 = vpop.f32.mrf.mxu0
    %v1751 = vpop.f32.mrf.mxu0
    %1752 = vdwg.mxu0
    %1753 = vmatprep.subr.bf16.mxu0 %v1385
    %1754 = vmatpush1.bf16.msra.mxu0 %v1384
    %1755 = vmatprep.subr.bf16.mxu0 %v1377
    %1756 = vmatpush1.bf16.msra.mxu0 %v1376
    %1757 = vmatprep.subr.bf16.mxu0 %v1369
    %1758 = vmatpush1.bf16.msra.mxu0 %v1368
    %1759 = vmatprep.subr.bf16.mxu0 %v1361
    %1760 = vmatpush1.bf16.msra.mxu0 %v1360
    %1761 = vmatprep.subr.bf16.mxu0 %v1353
    %1762 = vmatpush1.bf16.msra.mxu0 %v1352
    %1763 = vmatprep.subr.bf16.mxu0 %v1345
    %1764 = vmatpush1.bf16.msra.mxu0 %v1344
    %1765 = vmatprep.subr.bf16.mxu0 %v1337
    %1766 = vmatpush1.bf16.msra.mxu0 %v1336
    %1767 = vmatprep.subr.bf16.mxu0 %v1329
    %1768 = vmatpush1.bf16.msra.mxu0 %v1328
    %1769 = vmatprep.subr.bf16.mxu0 %v1449
    %1770 = vmatpush2.bf16.msra.mxu0 %v1448
    %1771 = vmatprep.subr.bf16.mxu0 %v1441
    %1772 = vmatpush2.bf16.msra.mxu0 %v1440
    %1773 = vmatprep.subr.bf16.mxu0 %v1433
    %1774 = vmatpush2.bf16.msra.mxu0 %v1432
    %1775 = vmatprep.subr.bf16.mxu0 %v1425
    %1776 = vmatpush2.bf16.msra.mxu0 %v1424
    %1777 = vmatprep.subr.bf16.mxu0 %v1417
    %1778 = vmatpush2.bf16.msra.mxu0 %v1416
    %1779 = vmatprep.subr.bf16.mxu0 %v1409
    %1780 = vmatpush2.bf16.msra.mxu0 %v1408
    %1781 = vmatprep.subr.bf16.mxu0 %v1401
    %1782 = vmatpush2.bf16.msra.mxu0 %v1400
    %1783 = vmatprep.subr.bf16.mxu0 %v1393
    %1784 = vmatpush2.bf16.msra.mxu0 %v1392
    %1785 = vmatprep.mubr.bf16.mxu0 %v427
    %1786 = vmatmul.mubr.bf16.gmra.mxu0 %v426
    %v1787 = vpop.f32.mrf.mxu0
    %v1788 = vadd.f32 %v1747, %v1787
    %v1789 = vpop.f32.mrf.mxu0
    %v1790 = vadd.f32 %v1749, %v1789
    %v1791 = vpop.f32.mrf.mxu0
    %v1792 = vpop.f32.mrf.mxu0
    %1793 = vdwg.mxu0
    %1794 = vmatprep.subr.bf16.mxu0 %v1259
    %1795 = vmatpush1.bf16.msra.mxu0 %v1258
    %1796 = vmatprep.subr.bf16.mxu0 %v1251
    %1797 = vmatpush1.bf16.msra.mxu0 %v1250
    %1798 = vmatprep.subr.bf16.mxu0 %v1243
    %1799 = vmatpush1.bf16.msra.mxu0 %v1242
    %1800 = vmatprep.subr.bf16.mxu0 %v1235
    %1801 = vmatpush1.bf16.msra.mxu0 %v1234
    %1802 = vmatprep.subr.bf16.mxu0 %v1227
    %1803 = vmatpush1.bf16.msra.mxu0 %v1226
    %1804 = vmatprep.subr.bf16.mxu0 %v1219
    %1805 = vmatpush1.bf16.msra.mxu0 %v1218
    %1806 = vmatprep.subr.bf16.mxu0 %v1211
    %1807 = vmatpush1.bf16.msra.mxu0 %v1210
    %1808 = vmatprep.subr.bf16.mxu0 %v1203
    %1809 = vmatpush1.bf16.msra.mxu0 %v1202
    %1810 = vmatprep.subr.bf16.mxu0 %v1323
    %1811 = vmatpush2.bf16.msra.mxu0 %v1322
    %1812 = vmatprep.subr.bf16.mxu0 %v1315
    %1813 = vmatpush2.bf16.msra.mxu0 %v1314
    %1814 = vmatprep.subr.bf16.mxu0 %v1307
    %1815 = vmatpush2.bf16.msra.mxu0 %v1306
    %1816 = vmatprep.subr.bf16.mxu0 %v1299
    %1817 = vmatpush2.bf16.msra.mxu0 %v1298
    %1818 = vmatprep.subr.bf16.mxu0 %v1291
    %1819 = vmatpush2.bf16.msra.mxu0 %v1290
    %1820 = vmatprep.subr.bf16.mxu0 %v1283
    %1821 = vmatpush2.bf16.msra.mxu0 %v1282
    %1822 = vmatprep.subr.bf16.mxu0 %v1275
    %1823 = vmatpush2.bf16.msra.mxu0 %v1274
    %1824 = vmatprep.subr.bf16.mxu0 %v1267
    %1825 = vmatpush2.bf16.msra.mxu0 %v1266
    %1826 = vmatprep.mubr.bf16.mxu0 %v425
    %1827 = vmatmul.mubr.bf16.gmra.mxu0 %v424
    %v1828 = vpop.f32.mrf.mxu0
    %v1829 = vadd.f32 %v389, %v1828
    %v1830 = vpop.f32.mrf.mxu0
    %v1831 = vadd.f32 %v393, %v1830
    %v1832 = vpop.f32.mrf.mxu0
    %v1833 = vpop.f32.mrf.mxu0
    %1834 = vdwg.mxu0
    %1835 = vmatprep.subr.bf16.mxu0 %v1387
    %1836 = vmatpush1.bf16.msra.mxu0 %v1386
    %1837 = vmatprep.subr.bf16.mxu0 %v1379
    %1838 = vmatpush1.bf16.msra.mxu0 %v1378
    %1839 = vmatprep.subr.bf16.mxu0 %v1371
    %1840 = vmatpush1.bf16.msra.mxu0 %v1370
    %1841 = vmatprep.subr.bf16.mxu0 %v1363
    %1842 = vmatpush1.bf16.msra.mxu0 %v1362
    %1843 = vmatprep.subr.bf16.mxu0 %v1355
    %1844 = vmatpush1.bf16.msra.mxu0 %v1354
    %1845 = vmatprep.subr.bf16.mxu0 %v1347
    %1846 = vmatpush1.bf16.msra.mxu0 %v1346
    %1847 = vmatprep.subr.bf16.mxu0 %v1339
    %1848 = vmatpush1.bf16.msra.mxu0 %v1338
    %1849 = vmatprep.subr.bf16.mxu0 %v1331
    %1850 = vmatpush1.bf16.msra.mxu0 %v1330
    %1851 = vmatprep.subr.bf16.mxu0 %v1451
    %1852 = vmatpush2.bf16.msra.mxu0 %v1450
    %1853 = vmatprep.subr.bf16.mxu0 %v1443
    %1854 = vmatpush2.bf16.msra.mxu0 %v1442
    %1855 = vmatprep.subr.bf16.mxu0 %v1435
    %1856 = vmatpush2.bf16.msra.mxu0 %v1434
    %1857 = vmatprep.subr.bf16.mxu0 %v1427
    %1858 = vmatpush2.bf16.msra.mxu0 %v1426
    %1859 = vmatprep.subr.bf16.mxu0 %v1419
    %1860 = vmatpush2.bf16.msra.mxu0 %v1418
    %1861 = vmatprep.subr.bf16.mxu0 %v1411
    %1862 = vmatpush2.bf16.msra.mxu0 %v1410
    %1863 = vmatprep.subr.bf16.mxu0 %v1403
    %1864 = vmatpush2.bf16.msra.mxu0 %v1402
    %1865 = vmatprep.subr.bf16.mxu0 %v1395
    %1866 = vmatpush2.bf16.msra.mxu0 %v1394
    %1867 = vmatprep.mubr.bf16.mxu0 %v427
    %1868 = vmatmul.mubr.bf16.gmra.mxu0 %v426
    %v1869 = vpop.f32.mrf.mxu0
    %v1870 = vadd.f32 %v1829, %v1869
    %v1871 = vpop.f32.mrf.mxu0
    %v1872 = vadd.f32 %v1831, %v1871
    %v1873 = vpop.f32.mrf.mxu0
    %v1874 = vpop.f32.mrf.mxu0
    %1875 = vdwg.mxu0
    %1876 = vmatprep.subr.bf16.mxu0 %v1261
    %1877 = vmatpush1.bf16.msra.mxu0 %v1260
    %1878 = vmatprep.subr.bf16.mxu0 %v1253
    %1879 = vmatpush1.bf16.msra.mxu0 %v1252
    %1880 = vmatprep.subr.bf16.mxu0 %v1245
    %1881 = vmatpush1.bf16.msra.mxu0 %v1244
    %1882 = vmatprep.subr.bf16.mxu0 %v1237
    %1883 = vmatpush1.bf16.msra.mxu0 %v1236
    %1884 = vmatprep.subr.bf16.mxu0 %v1229
    %1885 = vmatpush1.bf16.msra.mxu0 %v1228
    %1886 = vmatprep.subr.bf16.mxu0 %v1221
    %1887 = vmatpush1.bf16.msra.mxu0 %v1220
    %1888 = vmatprep.subr.bf16.mxu0 %v1213
    %1889 = vmatpush1.bf16.msra.mxu0 %v1212
    %1890 = vmatprep.subr.bf16.mxu0 %v1205
    %1891 = vmatpush1.bf16.msra.mxu0 %v1204
    %1892 = vmatprep.subr.bf16.mxu0 %v1325
    %1893 = vmatpush2.bf16.msra.mxu0 %v1324
    %1894 = vmatprep.subr.bf16.mxu0 %v1317
    %1895 = vmatpush2.bf16.msra.mxu0 %v1316
    %1896 = vmatprep.subr.bf16.mxu0 %v1309
    %1897 = vmatpush2.bf16.msra.mxu0 %v1308
    %1898 = vmatprep.subr.bf16.mxu0 %v1301
    %1899 = vmatpush2.bf16.msra.mxu0 %v1300
    %1900 = vmatprep.subr.bf16.mxu0 %v1293
    %1901 = vmatpush2.bf16.msra.mxu0 %v1292
    %1902 = vmatprep.subr.bf16.mxu0 %v1285
    %1903 = vmatpush2.bf16.msra.mxu0 %v1284
    %1904 = vmatprep.subr.bf16.mxu0 %v1277
    %1905 = vmatpush2.bf16.msra.mxu0 %v1276
    %1906 = vmatprep.subr.bf16.mxu0 %v1269
    %1907 = vmatpush2.bf16.msra.mxu0 %v1268
    %1908 = vmatprep.mubr.bf16.mxu0 %v425
    %1909 = vmatmul.mubr.bf16.gmra.mxu0 %v424
    %v1910 = vpop.f32.mrf.mxu0
    %v1911 = vadd.f32 %v397, %v1910
    %v1912 = vpop.f32.mrf.mxu0
    %v1913 = vadd.f32 %v401, %v1912
    %v1914 = vpop.f32.mrf.mxu0
    %v1915 = vpop.f32.mrf.mxu0
    %1916 = vdwg.mxu0
    %1917 = vmatprep.subr.bf16.mxu0 %v1389
    %1918 = vmatpush1.bf16.msra.mxu0 %v1388
    %1919 = vmatprep.subr.bf16.mxu0 %v1381
    %1920 = vmatpush1.bf16.msra.mxu0 %v1380
    %1921 = vmatprep.subr.bf16.mxu0 %v1373
    %1922 = vmatpush1.bf16.msra.mxu0 %v1372
    %1923 = vmatprep.subr.bf16.mxu0 %v1365
    %1924 = vmatpush1.bf16.msra.mxu0 %v1364
    %1925 = vmatprep.subr.bf16.mxu0 %v1357
    %1926 = vmatpush1.bf16.msra.mxu0 %v1356
    %1927 = vmatprep.subr.bf16.mxu0 %v1349
    %1928 = vmatpush1.bf16.msra.mxu0 %v1348
    %1929 = vmatprep.subr.bf16.mxu0 %v1341
    %1930 = vmatpush1.bf16.msra.mxu0 %v1340
    %1931 = vmatprep.subr.bf16.mxu0 %v1333
    %1932 = vmatpush1.bf16.msra.mxu0 %v1332
    %1933 = vmatprep.subr.bf16.mxu0 %v1453
    %1934 = vmatpush2.bf16.msra.mxu0 %v1452
    %1935 = vmatprep.subr.bf16.mxu0 %v1445
    %1936 = vmatpush2.bf16.msra.mxu0 %v1444
    %1937 = vmatprep.subr.bf16.mxu0 %v1437
    %1938 = vmatpush2.bf16.msra.mxu0 %v1436
    %1939 = vmatprep.subr.bf16.mxu0 %v1429
    %1940 = vmatpush2.bf16.msra.mxu0 %v1428
    %1941 = vmatprep.subr.bf16.mxu0 %v1421
    %1942 = vmatpush2.bf16.msra.mxu0 %v1420
    %1943 = vmatprep.subr.bf16.mxu0 %v1413
    %1944 = vmatpush2.bf16.msra.mxu0 %v1412
    %1945 = vmatprep.subr.bf16.mxu0 %v1405
    %1946 = vmatpush2.bf16.msra.mxu0 %v1404
    %1947 = vmatprep.subr.bf16.mxu0 %v1397
    %1948 = vmatpush2.bf16.msra.mxu0 %v1396
    %1949 = vmatprep.mubr.bf16.mxu0 %v427
    %1950 = vmatmul.mubr.bf16.gmra.mxu0 %v426
    %v1951 = vpop.f32.mrf.mxu0
    %v1952 = vadd.f32 %v1911, %v1951
    %v1953 = vpop.f32.mrf.mxu0
    %v1954 = vadd.f32 %v1913, %v1953
    %v1955 = vpop.f32.mrf.mxu0
    %v1956 = vpop.f32.mrf.mxu0
    %1957 = vdwg.mxu0
    %1958 = vmatprep.subr.bf16.mxu0 %v1263
    %1959 = vmatpush1.bf16.msra.mxu0 %v1262
    %1960 = vmatprep.subr.bf16.mxu0 %v1255
    %1961 = vmatpush1.bf16.msra.mxu0 %v1254
    %1962 = vmatprep.subr.bf16.mxu0 %v1247
    %1963 = vmatpush1.bf16.msra.mxu0 %v1246
    %1964 = vmatprep.subr.bf16.mxu0 %v1239
    %1965 = vmatpush1.bf16.msra.mxu0 %v1238
    %1966 = vmatprep.subr.bf16.mxu0 %v1231
    %1967 = vmatpush1.bf16.msra.mxu0 %v1230
    %1968 = vmatprep.subr.bf16.mxu0 %v1223
    %1969 = vmatpush1.bf16.msra.mxu0 %v1222
    %1970 = vmatprep.subr.bf16.mxu0 %v1215
    %1971 = vmatpush1.bf16.msra.mxu0 %v1214
    %1972 = vmatprep.subr.bf16.mxu0 %v1207
    %1973 = vmatpush1.bf16.msra.mxu0 %v1206
    %1974 = vmatprep.subr.bf16.mxu0 %v1327
    %1975 = vmatpush2.bf16.msra.mxu0 %v1326
    %1976 = vmatprep.subr.bf16.mxu0 %v1319
    %1977 = vmatpush2.bf16.msra.mxu0 %v1318
    %1978 = vmatprep.subr.bf16.mxu0 %v1311
    %1979 = vmatpush2.bf16.msra.mxu0 %v1310
    %1980 = vmatprep.subr.bf16.mxu0 %v1303
    %1981 = vmatpush2.bf16.msra.mxu0 %v1302
    %1982 = vmatprep.subr.bf16.mxu0 %v1295
    %1983 = vmatpush2.bf16.msra.mxu0 %v1294
    %1984 = vmatprep.subr.bf16.mxu0 %v1287
    %1985 = vmatpush2.bf16.msra.mxu0 %v1286
    %1986 = vmatprep.subr.bf16.mxu0 %v1279
    %1987 = vmatpush2.bf16.msra.mxu0 %v1278
    %1988 = vmatprep.subr.bf16.mxu0 %v1271
    %1989 = vmatpush2.bf16.msra.mxu0 %v1270
    %1990 = vmatprep.mubr.bf16.mxu0 %v425
    %1991 = vmatmul.mubr.bf16.gmra.mxu0 %v424
    %v1992 = vpop.f32.mrf.mxu0
    %v1993 = vadd.f32 %v405, %v1992
    %v1994 = vpop.f32.mrf.mxu0
    %v1995 = vadd.f32 %v409, %v1994
    %v1996 = vpop.f32.mrf.mxu0
    %v1997 = vpop.f32.mrf.mxu0
    %1998 = vdwg.mxu0
    %1999 = vmatprep.subr.bf16.mxu0 %v1391
    %2000 = vmatpush1.bf16.msra.mxu0 %v1390
    %2001 = vmatprep.subr.bf16.mxu0 %v1383
    %2002 = vmatpush1.bf16.msra.mxu0 %v1382
    %2003 = vmatprep.subr.bf16.mxu0 %v1375
    %2004 = vmatpush1.bf16.msra.mxu0 %v1374
    %2005 = vmatprep.subr.bf16.mxu0 %v1367
    %2006 = vmatpush1.bf16.msra.mxu0 %v1366
    %2007 = vmatprep.subr.bf16.mxu0 %v1359
    %2008 = vmatpush1.bf16.msra.mxu0 %v1358
    %2009 = vmatprep.subr.bf16.mxu0 %v1351
    %2010 = vmatpush1.bf16.msra.mxu0 %v1350
    %2011 = vmatprep.subr.bf16.mxu0 %v1343
    %2012 = vmatpush1.bf16.msra.mxu0 %v1342
    %2013 = vmatprep.subr.bf16.mxu0 %v1335
    %2014 = vmatpush1.bf16.msra.mxu0 %v1334
    %2015 = vmatprep.subr.bf16.mxu0 %v1455
    %2016 = vmatpush2.bf16.msra.mxu0 %v1454
    %2017 = vmatprep.subr.bf16.mxu0 %v1447
    %2018 = vmatpush2.bf16.msra.mxu0 %v1446
    %2019 = vmatprep.subr.bf16.mxu0 %v1439
    %2020 = vmatpush2.bf16.msra.mxu0 %v1438
    %2021 = vmatprep.subr.bf16.mxu0 %v1431
    %2022 = vmatpush2.bf16.msra.mxu0 %v1430
    %2023 = vmatprep.subr.bf16.mxu0 %v1423
    %2024 = vmatpush2.bf16.msra.mxu0 %v1422
    %2025 = vmatprep.subr.bf16.mxu0 %v1415
    %2026 = vmatpush2.bf16.msra.mxu0 %v1414
    %2027 = vmatprep.subr.bf16.mxu0 %v1407
    %2028 = vmatpush2.bf16.msra.mxu0 %v1406
    %2029 = vmatprep.subr.bf16.mxu0 %v1399
    %2030 = vmatpush2.bf16.msra.mxu0 %v1398
    %2031 = vmatprep.mubr.bf16.mxu0 %v427
    %2032 = vmatmul.mubr.bf16.gmra.mxu0 %v426
    %v2033 = vpop.f32.mrf.mxu0
    %v2034 = vadd.f32 %v1993, %v2033
    %v2035 = vpop.f32.mrf.mxu0
    %v2036 = vadd.f32 %v1995, %v2035
    %v2037 = vpop.f32.mrf.mxu0
    %v2038 = vpop.f32.mrf.mxu0
    %2039 = vdwg.mxu0
    %v2040 = vmax.f32 %v1788, 0.0
    %v2041 = vmax.f32 %v1790, 0.0
    %v2042 = vmax.f32 %v1870, 0.0
    %v2043 = vmax.f32 %v1872, 0.0
    %v2044 = vmax.f32 %v1952, 0.0
    %v2045 = vmax.f32 %v1954, 0.0
    %v2046 = vmax.f32 %v2034, 0.0
    %v2047 = vmax.f32 %v2036, 0.0
    %v2048 = vpack.c.bf16 %v2040, %v2040
    %v2049 = vpack.c.bf16 %v2041, %v2041
    %v2050 = vpack.c.bf16 %v2042, %v2042
    %v2051 = vpack.c.bf16 %v2043, %v2043
    %v2052 = vpack.c.bf16 %v2044, %v2044
    %v2053 = vpack.c.bf16 %v2045, %v2045
    %v2054 = vpack.c.bf16 %v2046, %v2046
    %v2055 = vpack.c.bf16 %v2047, %v2047
    %v2056 = vld [vmem:[#allocation8] sm:$0xf]
    %v2057 = vld [vmem:[#allocation8 + $0x4] sm:$0xf]
    %v2058 = vld [vmem:[#allocation8 + $0x8] sm:$0xf]
    %v2059 = vld [vmem:[#allocation8 + $0xc] sm:$0xf]
    %v2060 = vld [vmem:[#allocation8 + $0x10] sm:$0xf]
    %v2061 = vld [vmem:[#allocation8 + $0x14] sm:$0xf]
    %v2062 = vld [vmem:[#allocation8 + $0x18] sm:$0xf]
    %v2063 = vld [vmem:[#allocation8 + $0x1c] sm:$0xf]
    %v2064 = vld [vmem:[#allocation8 + $0x20] sm:$0xf]
    %v2065 = vld [vmem:[#allocation8 + $0x24] sm:$0xf]
    %v2066 = vld [vmem:[#allocation8 + $0x28] sm:$0xf]
    %v2067 = vld [vmem:[#allocation8 + $0x2c] sm:$0xf]
    %v2068 = vld [vmem:[#allocation8 + $0x30] sm:$0xf]
    %v2069 = vld [vmem:[#allocation8 + $0x34] sm:$0xf]
    %v2070 = vld [vmem:[#allocation8 + $0x38] sm:$0xf]
    %v2071 = vld [vmem:[#allocation8 + $0x3c] sm:$0xf]
    %v2072 = vld [vmem:[#allocation8 + $0x40] sm:$0xf]
    %v2073 = vld [vmem:[#allocation8 + $0x44] sm:$0xf]
    %v2074 = vld [vmem:[#allocation8 + $0x48] sm:$0xf]
    %v2075 = vld [vmem:[#allocation8 + $0x4c] sm:$0xf]
    %v2076 = vld [vmem:[#allocation8 + $0x50] sm:$0xf]
    %v2077 = vld [vmem:[#allocation8 + $0x54] sm:$0xf]
    %v2078 = vld [vmem:[#allocation8 + $0x58] sm:$0xf]
    %v2079 = vld [vmem:[#allocation8 + $0x5c] sm:$0xf]
    %v2080 = vld [vmem:[#allocation8 + $0x60] sm:$0xf]
    %v2081 = vld [vmem:[#allocation8 + $0x64] sm:$0xf]
    %v2082 = vld [vmem:[#allocation8 + $0x68] sm:$0xf]
    %v2083 = vld [vmem:[#allocation8 + $0x6c] sm:$0xf]
    %v2084 = vld [vmem:[#allocation8 + $0x70] sm:$0xf]
    %v2085 = vld [vmem:[#allocation8 + $0x74] sm:$0xf]
    %v2086 = vld [vmem:[#allocation8 + $0x78] sm:$0xf]
    %v2087 = vld [vmem:[#allocation8 + $0x7c] sm:$0xf]
    %v2088 = vld [vmem:[#allocation8 + $0x80] sm:$0xf]
    %v2089 = vld [vmem:[#allocation8 + $0x84] sm:$0xf]
    %v2090 = vld [vmem:[#allocation8 + $0x88] sm:$0xf]
    %v2091 = vld [vmem:[#allocation8 + $0x8c] sm:$0xf]
    %v2092 = vld [vmem:[#allocation8 + $0x90] sm:$0xf]
    %v2093 = vld [vmem:[#allocation8 + $0x94] sm:$0xf]
    %v2094 = vld [vmem:[#allocation8 + $0x98] sm:$0xf]
    %v2095 = vld [vmem:[#allocation8 + $0x9c] sm:$0xf]
    %v2096 = vld [vmem:[#allocation8 + $0xa0] sm:$0xf]
    %v2097 = vld [vmem:[#allocation8 + $0xa4] sm:$0xf]
    %v2098 = vld [vmem:[#allocation8 + $0xa8] sm:$0xf]
    %v2099 = vld [vmem:[#allocation8 + $0xac] sm:$0xf]
    %v2100 = vld [vmem:[#allocation8 + $0xb0] sm:$0xf]
    %v2101 = vld [vmem:[#allocation8 + $0xb4] sm:$0xf]
    %v2102 = vld [vmem:[#allocation8 + $0xb8] sm:$0xf]
    %v2103 = vld [vmem:[#allocation8 + $0xbc] sm:$0xf]
    %v2104 = vld [vmem:[#allocation8 + $0xc0] sm:$0xf]
    %v2105 = vld [vmem:[#allocation8 + $0xc4] sm:$0xf]
    %v2106 = vld [vmem:[#allocation8 + $0xc8] sm:$0xf]
    %v2107 = vld [vmem:[#allocation8 + $0xcc] sm:$0xf]
    %v2108 = vld [vmem:[#allocation8 + $0xd0] sm:$0xf]
    %v2109 = vld [vmem:[#allocation8 + $0xd4] sm:$0xf]
    %v2110 = vld [vmem:[#allocation8 + $0xd8] sm:$0xf]
    %v2111 = vld [vmem:[#allocation8 + $0xdc] sm:$0xf]
    %v2112 = vld [vmem:[#allocation8 + $0xe0] sm:$0xf]
    %v2113 = vld [vmem:[#allocation8 + $0xe4] sm:$0xf]
    %v2114 = vld [vmem:[#allocation8 + $0xe8] sm:$0xf]
    %v2115 = vld [vmem:[#allocation8 + $0xec] sm:$0xf]
    %v2116 = vld [vmem:[#allocation8 + $0xf0] sm:$0xf]
    %v2117 = vld [vmem:[#allocation8 + $0xf4] sm:$0xf]
    %v2118 = vld [vmem:[#allocation8 + $0xf8] sm:$0xf]
    %v2119 = vld [vmem:[#allocation8 + $0xfc] sm:$0xf]
    %v2120 = vld [vmem:[#allocation8 + $0x100] sm:$0xf]
    %v2121 = vld [vmem:[#allocation8 + $0x104] sm:$0xf]
    %v2122 = vld [vmem:[#allocation8 + $0x108] sm:$0xf]
    %v2123 = vld [vmem:[#allocation8 + $0x10c] sm:$0xf]
    %v2124 = vld [vmem:[#allocation8 + $0x110] sm:$0xf]
    %v2125 = vld [vmem:[#allocation8 + $0x114] sm:$0xf]
    %v2126 = vld [vmem:[#allocation8 + $0x118] sm:$0xf]
    %v2127 = vld [vmem:[#allocation8 + $0x11c] sm:$0xf]
    %v2128 = vld [vmem:[#allocation8 + $0x120] sm:$0xf]
    %v2129 = vld [vmem:[#allocation8 + $0x124] sm:$0xf]
    %v2130 = vld [vmem:[#allocation8 + $0x128] sm:$0xf]
    %v2131 = vld [vmem:[#allocation8 + $0x12c] sm:$0xf]
    %v2132 = vld [vmem:[#allocation8 + $0x130] sm:$0xf]
    %v2133 = vld [vmem:[#allocation8 + $0x134] sm:$0xf]
    %v2134 = vld [vmem:[#allocation8 + $0x138] sm:$0xf]
    %v2135 = vld [vmem:[#allocation8 + $0x13c] sm:$0xf]
    %v2136 = vld [vmem:[#allocation8 + $0x140] sm:$0xf]
    %v2137 = vld [vmem:[#allocation8 + $0x144] sm:$0xf]
    %v2138 = vld [vmem:[#allocation8 + $0x148] sm:$0xf]
    %v2139 = vld [vmem:[#allocation8 + $0x14c] sm:$0xf]
    %v2140 = vld [vmem:[#allocation8 + $0x150] sm:$0xf]
    %v2141 = vld [vmem:[#allocation8 + $0x154] sm:$0xf]
    %v2142 = vld [vmem:[#allocation8 + $0x158] sm:$0xf]
    %v2143 = vld [vmem:[#allocation8 + $0x15c] sm:$0xf]
    %v2144 = vld [vmem:[#allocation8 + $0x160] sm:$0xf]
    %v2145 = vld [vmem:[#allocation8 + $0x164] sm:$0xf]
    %v2146 = vld [vmem:[#allocation8 + $0x168] sm:$0xf]
    %v2147 = vld [vmem:[#allocation8 + $0x16c] sm:$0xf]
    %v2148 = vld [vmem:[#allocation8 + $0x170] sm:$0xf]
    %v2149 = vld [vmem:[#allocation8 + $0x174] sm:$0xf]
    %v2150 = vld [vmem:[#allocation8 + $0x178] sm:$0xf]
    %v2151 = vld [vmem:[#allocation8 + $0x17c] sm:$0xf]
    %v2152 = vld [vmem:[#allocation8 + $0x180] sm:$0xf]
    %v2153 = vld [vmem:[#allocation8 + $0x184] sm:$0xf]
    %v2154 = vld [vmem:[#allocation8 + $0x188] sm:$0xf]
    %v2155 = vld [vmem:[#allocation8 + $0x18c] sm:$0xf]
    %v2156 = vld [vmem:[#allocation8 + $0x190] sm:$0xf]
    %v2157 = vld [vmem:[#allocation8 + $0x194] sm:$0xf]
    %v2158 = vld [vmem:[#allocation8 + $0x198] sm:$0xf]
    %v2159 = vld [vmem:[#allocation8 + $0x19c] sm:$0xf]
    %v2160 = vld [vmem:[#allocation8 + $0x1a0] sm:$0xf]
    %v2161 = vld [vmem:[#allocation8 + $0x1a4] sm:$0xf]
    %v2162 = vld [vmem:[#allocation8 + $0x1a8] sm:$0xf]
    %v2163 = vld [vmem:[#allocation8 + $0x1ac] sm:$0xf]
    %v2164 = vld [vmem:[#allocation8 + $0x1b0] sm:$0xf]
    %v2165 = vld [vmem:[#allocation8 + $0x1b4] sm:$0xf]
    %v2166 = vld [vmem:[#allocation8 + $0x1b8] sm:$0xf]
    %v2167 = vld [vmem:[#allocation8 + $0x1bc] sm:$0xf]
    %v2168 = vld [vmem:[#allocation8 + $0x1c0] sm:$0xf]
    %v2169 = vld [vmem:[#allocation8 + $0x1c4] sm:$0xf]
    %v2170 = vld [vmem:[#allocation8 + $0x1c8] sm:$0xf]
    %v2171 = vld [vmem:[#allocation8 + $0x1cc] sm:$0xf]
    %v2172 = vld [vmem:[#allocation8 + $0x1d0] sm:$0xf]
    %v2173 = vld [vmem:[#allocation8 + $0x1d4] sm:$0xf]
    %v2174 = vld [vmem:[#allocation8 + $0x1d8] sm:$0xf]
    %v2175 = vld [vmem:[#allocation8 + $0x1dc] sm:$0xf]
    %v2176 = vld [vmem:[#allocation8 + $0x1e0] sm:$0xf]
    %v2177 = vld [vmem:[#allocation8 + $0x1e4] sm:$0xf]
    %v2178 = vld [vmem:[#allocation8 + $0x1e8] sm:$0xf]
    %v2179 = vld [vmem:[#allocation8 + $0x1ec] sm:$0xf]
    %v2180 = vld [vmem:[#allocation8 + $0x1f0] sm:$0xf]
    %v2181 = vld [vmem:[#allocation8 + $0x1f4] sm:$0xf]
    %v2182 = vld [vmem:[#allocation8 + $0x1f8] sm:$0xf]
    %v2183 = vld [vmem:[#allocation8 + $0x1fc] sm:$0xf]
    %v2184 = vld [vmem:[%s4] sm:$0x1]
    %v2186 = vlaneseq
    %v2187 = vshrl.u32 %v2186, 7
    %v2188 = vsub.s32 0, %v2187
    %v2189 = vrot.slane %v2184, %v2188
    %v2319 = vunpack.c.l.b16 %v2056
    %v2320 = vunpack.c.l.b16 %v2057
    %v2321 = vunpack.c.l.b16 %v2058
    %v2322 = vunpack.c.l.b16 %v2059
    %v2323 = vunpack.c.l.b16 %v2060
    %v2324 = vunpack.c.l.b16 %v2061
    %v2325 = vunpack.c.l.b16 %v2062
    %v2326 = vunpack.c.l.b16 %v2063
    %v2327 = vunpack.c.l.b16 %v2064
    %v2328 = vunpack.c.l.b16 %v2065
    %v2329 = vunpack.c.l.b16 %v2066
    %v2330 = vunpack.c.l.b16 %v2067
    %v2331 = vunpack.c.l.b16 %v2068
    %v2332 = vunpack.c.l.b16 %v2069
    %v2333 = vunpack.c.l.b16 %v2070
    %v2334 = vunpack.c.l.b16 %v2071
    %v2335 = vunpack.c.l.b16 %v2072
    %v2336 = vunpack.c.l.b16 %v2073
    %v2337 = vunpack.c.l.b16 %v2074
    %v2338 = vunpack.c.l.b16 %v2075
    %v2339 = vunpack.c.l.b16 %v2076
    %v2340 = vunpack.c.l.b16 %v2077
    %v2341 = vunpack.c.l.b16 %v2078
    %v2342 = vunpack.c.l.b16 %v2079
    %v2343 = vunpack.c.l.b16 %v2080
    %v2344 = vunpack.c.l.b16 %v2081
    %v2345 = vunpack.c.l.b16 %v2082
    %v2346 = vunpack.c.l.b16 %v2083
    %v2347 = vunpack.c.l.b16 %v2084
    %v2348 = vunpack.c.l.b16 %v2085
    %v2349 = vunpack.c.l.b16 %v2086
    %v2350 = vunpack.c.l.b16 %v2087
    %v2351 = vunpack.c.l.b16 %v2088
    %v2352 = vunpack.c.l.b16 %v2089
    %v2353 = vunpack.c.l.b16 %v2090
    %v2354 = vunpack.c.l.b16 %v2091
    %v2355 = vunpack.c.l.b16 %v2092
    %v2356 = vunpack.c.l.b16 %v2093
    %v2357 = vunpack.c.l.b16 %v2094
    %v2358 = vunpack.c.l.b16 %v2095
    %v2359 = vunpack.c.l.b16 %v2096
    %v2360 = vunpack.c.l.b16 %v2097
    %v2361 = vunpack.c.l.b16 %v2098
    %v2362 = vunpack.c.l.b16 %v2099
    %v2363 = vunpack.c.l.b16 %v2100
    %v2364 = vunpack.c.l.b16 %v2101
    %v2365 = vunpack.c.l.b16 %v2102
    %v2366 = vunpack.c.l.b16 %v2103
    %v2367 = vunpack.c.l.b16 %v2104
    %v2368 = vunpack.c.l.b16 %v2105
    %v2369 = vunpack.c.l.b16 %v2106
    %v2370 = vunpack.c.l.b16 %v2107
    %v2371 = vunpack.c.l.b16 %v2108
    %v2372 = vunpack.c.l.b16 %v2109
    %v2373 = vunpack.c.l.b16 %v2110
    %v2374 = vunpack.c.l.b16 %v2111
    %v2375 = vunpack.c.l.b16 %v2112
    %v2376 = vunpack.c.l.b16 %v2113
    %v2377 = vunpack.c.l.b16 %v2114
    %v2378 = vunpack.c.l.b16 %v2115
    %v2379 = vunpack.c.l.b16 %v2116
    %v2380 = vunpack.c.l.b16 %v2117
    %v2381 = vunpack.c.l.b16 %v2118
    %v2382 = vunpack.c.l.b16 %v2119
    %v2383 = vunpack.c.l.b16 %v2120
    %v2384 = vunpack.c.l.b16 %v2121
    %v2385 = vunpack.c.l.b16 %v2122
    %v2386 = vunpack.c.l.b16 %v2123
    %v2387 = vunpack.c.l.b16 %v2124
    %v2388 = vunpack.c.l.b16 %v2125
    %v2389 = vunpack.c.l.b16 %v2126
    %v2390 = vunpack.c.l.b16 %v2127
    %v2391 = vunpack.c.l.b16 %v2128
    %v2392 = vunpack.c.l.b16 %v2129
    %v2393 = vunpack.c.l.b16 %v2130
    %v2394 = vunpack.c.l.b16 %v2131
    %v2395 = vunpack.c.l.b16 %v2132
    %v2396 = vunpack.c.l.b16 %v2133
    %v2397 = vunpack.c.l.b16 %v2134
    %v2398 = vunpack.c.l.b16 %v2135
    %v2399 = vunpack.c.l.b16 %v2136
    %v2400 = vunpack.c.l.b16 %v2137
    %v2401 = vunpack.c.l.b16 %v2138
    %v2402 = vunpack.c.l.b16 %v2139
    %v2403 = vunpack.c.l.b16 %v2140
    %v2404 = vunpack.c.l.b16 %v2141
    %v2405 = vunpack.c.l.b16 %v2142
    %v2406 = vunpack.c.l.b16 %v2143
    %v2407 = vunpack.c.l.b16 %v2144
    %v2408 = vunpack.c.l.b16 %v2145
    %v2409 = vunpack.c.l.b16 %v2146
    %v2410 = vunpack.c.l.b16 %v2147
    %v2411 = vunpack.c.l.b16 %v2148
    %v2412 = vunpack.c.l.b16 %v2149
    %v2413 = vunpack.c.l.b16 %v2150
    %v2414 = vunpack.c.l.b16 %v2151
    %v2415 = vunpack.c.l.b16 %v2152
    %v2416 = vunpack.c.l.b16 %v2153
    %v2417 = vunpack.c.l.b16 %v2154
    %v2418 = vunpack.c.l.b16 %v2155
    %v2419 = vunpack.c.l.b16 %v2156
    %v2420 = vunpack.c.l.b16 %v2157
    %v2421 = vunpack.c.l.b16 %v2158
    %v2422 = vunpack.c.l.b16 %v2159
    %v2423 = vunpack.c.l.b16 %v2160
    %v2424 = vunpack.c.l.b16 %v2161
    %v2425 = vunpack.c.l.b16 %v2162
    %v2426 = vunpack.c.l.b16 %v2163
    %v2427 = vunpack.c.l.b16 %v2164
    %v2428 = vunpack.c.l.b16 %v2165
    %v2429 = vunpack.c.l.b16 %v2166
    %v2430 = vunpack.c.l.b16 %v2167
    %v2431 = vunpack.c.l.b16 %v2168
    %v2432 = vunpack.c.l.b16 %v2169
    %v2433 = vunpack.c.l.b16 %v2170
    %v2434 = vunpack.c.l.b16 %v2171
    %v2435 = vunpack.c.l.b16 %v2172
    %v2436 = vunpack.c.l.b16 %v2173
    %v2437 = vunpack.c.l.b16 %v2174
    %v2438 = vunpack.c.l.b16 %v2175
    %v2439 = vunpack.c.l.b16 %v2176
    %v2440 = vunpack.c.l.b16 %v2177
    %v2441 = vunpack.c.l.b16 %v2178
    %v2442 = vunpack.c.l.b16 %v2179
    %v2443 = vunpack.c.l.b16 %v2180
    %v2444 = vunpack.c.l.b16 %v2181
    %v2445 = vunpack.c.l.b16 %v2182
    %v2446 = vunpack.c.l.b16 %v2183
    %v2447 = vpack.c.b16 %v2320, %v2319
    %v2448 = vpack.c.b16 %v2322, %v2321
    %v2449 = vpack.c.b16 %v2324, %v2323
    %v2450 = vpack.c.b16 %v2326, %v2325
    %v2451 = vpack.c.b16 %v2328, %v2327
    %v2452 = vpack.c.b16 %v2330, %v2329
    %v2453 = vpack.c.b16 %v2332, %v2331
    %v2454 = vpack.c.b16 %v2334, %v2333
    %v2455 = vpack.c.b16 %v2336, %v2335
    %v2456 = vpack.c.b16 %v2338, %v2337
    %v2457 = vpack.c.b16 %v2340, %v2339
    %v2458 = vpack.c.b16 %v2342, %v2341
    %v2459 = vpack.c.b16 %v2344, %v2343
    %v2460 = vpack.c.b16 %v2346, %v2345
    %v2461 = vpack.c.b16 %v2348, %v2347
    %v2462 = vpack.c.b16 %v2350, %v2349
    %v2463 = vpack.c.b16 %v2352, %v2351
    %v2464 = vpack.c.b16 %v2354, %v2353
    %v2465 = vpack.c.b16 %v2356, %v2355
    %v2466 = vpack.c.b16 %v2358, %v2357
    %v2467 = vpack.c.b16 %v2360, %v2359
    %v2468 = vpack.c.b16 %v2362, %v2361
    %v2469 = vpack.c.b16 %v2364, %v2363
    %v2470 = vpack.c.b16 %v2366, %v2365
    %v2471 = vpack.c.b16 %v2368, %v2367
    %v2472 = vpack.c.b16 %v2370, %v2369
    %v2473 = vpack.c.b16 %v2372, %v2371
    %v2474 = vpack.c.b16 %v2374, %v2373
    %v2475 = vpack.c.b16 %v2376, %v2375
    %v2476 = vpack.c.b16 %v2378, %v2377
    %v2477 = vpack.c.b16 %v2380, %v2379
    %v2478 = vpack.c.b16 %v2382, %v2381
    %v2479 = vpack.c.b16 %v2384, %v2383
    %v2480 = vpack.c.b16 %v2386, %v2385
    %v2481 = vpack.c.b16 %v2388, %v2387
    %v2482 = vpack.c.b16 %v2390, %v2389
    %v2483 = vpack.c.b16 %v2392, %v2391
    %v2484 = vpack.c.b16 %v2394, %v2393
    %v2485 = vpack.c.b16 %v2396, %v2395
    %v2486 = vpack.c.b16 %v2398, %v2397
    %v2487 = vpack.c.b16 %v2400, %v2399
    %v2488 = vpack.c.b16 %v2402, %v2401
    %v2489 = vpack.c.b16 %v2404, %v2403
    %v2490 = vpack.c.b16 %v2406, %v2405
    %v2491 = vpack.c.b16 %v2408, %v2407
    %v2492 = vpack.c.b16 %v2410, %v2409
    %v2493 = vpack.c.b16 %v2412, %v2411
    %v2494 = vpack.c.b16 %v2414, %v2413
    %v2495 = vpack.c.b16 %v2416, %v2415
    %v2496 = vpack.c.b16 %v2418, %v2417
    %v2497 = vpack.c.b16 %v2420, %v2419
    %v2498 = vpack.c.b16 %v2422, %v2421
    %v2499 = vpack.c.b16 %v2424, %v2423
    %v2500 = vpack.c.b16 %v2426, %v2425
    %v2501 = vpack.c.b16 %v2428, %v2427
    %v2502 = vpack.c.b16 %v2430, %v2429
    %v2503 = vpack.c.b16 %v2432, %v2431
    %v2504 = vpack.c.b16 %v2434, %v2433
    %v2505 = vpack.c.b16 %v2436, %v2435
    %v2506 = vpack.c.b16 %v2438, %v2437
    %v2507 = vpack.c.b16 %v2440, %v2439
    %v2508 = vpack.c.b16 %v2442, %v2441
    %v2509 = vpack.c.b16 %v2444, %v2443
    %v2510 = vpack.c.b16 %v2446, %v2445
    %2575 = vmatprep.subr.bf16.mxu0 0
    %2576 = vmatpush1.bf16.msra.mxu0 %v2454
    %2577 = vmatprep.subr.bf16.mxu0 0
    %2578 = vmatpush1.bf16.msra.mxu0 %v2453
    %2579 = vmatprep.subr.bf16.mxu0 0
    %2580 = vmatpush1.bf16.msra.mxu0 %v2452
    %2581 = vmatprep.subr.bf16.mxu0 0
    %2582 = vmatpush1.bf16.msra.mxu0 %v2451
    %2583 = vmatprep.subr.bf16.mxu0 0
    %2584 = vmatpush1.bf16.msra.mxu0 %v2450
    %2585 = vmatprep.subr.bf16.mxu0 0
    %2586 = vmatpush1.bf16.msra.mxu0 %v2449
    %2587 = vmatprep.subr.bf16.mxu0 0
    %2588 = vmatpush1.bf16.msra.mxu0 %v2448
    %2589 = vmatprep.subr.bf16.mxu0 0
    %2590 = vmatpush1.bf16.msra.mxu0 %v2447
    %2591 = vmatprep.subr.bf16.mxu0 0
    %2592 = vmatpush2.bf16.msra.mxu0 %v2462
    %2593 = vmatprep.subr.bf16.mxu0 0
    %2594 = vmatpush2.bf16.msra.mxu0 %v2461
    %2595 = vmatprep.subr.bf16.mxu0 0
    %2596 = vmatpush2.bf16.msra.mxu0 %v2460
    %2597 = vmatprep.subr.bf16.mxu0 0
    %2598 = vmatpush2.bf16.msra.mxu0 %v2459
    %2599 = vmatprep.subr.bf16.mxu0 0
    %2600 = vmatpush2.bf16.msra.mxu0 %v2458
    %2601 = vmatprep.subr.bf16.mxu0 0
    %2602 = vmatpush2.bf16.msra.mxu0 %v2457
    %2603 = vmatprep.subr.bf16.mxu0 0
    %2604 = vmatpush2.bf16.msra.mxu0 %v2456
    %2605 = vmatprep.subr.bf16.mxu0 0
    %2606 = vmatpush2.bf16.msra.mxu0 %v2455
    %2607 = vmatprep.mubr.bf16.mxu0 %v2049
    %2608 = vmatmul.mubr.bf16.gmra.mxu0 %v2048
    %v2609 = vpop.f32.mrf.mxu0
    %v2610 = vadd.f32 %v2189, %v2609
    %v2611 = vpop.f32.mrf.mxu0
    %v2612 = vpop.f32.mrf.mxu0
    %v2613 = vpop.f32.mrf.mxu0
    %2614 = vdwg.mxu0
    %2615 = vmatprep.subr.bf16.mxu0 0
    %2616 = vmatpush1.bf16.msra.mxu0 %v2470
    %2617 = vmatprep.subr.bf16.mxu0 0
    %2618 = vmatpush1.bf16.msra.mxu0 %v2469
    %2619 = vmatprep.subr.bf16.mxu0 0
    %2620 = vmatpush1.bf16.msra.mxu0 %v2468
    %2621 = vmatprep.subr.bf16.mxu0 0
    %2622 = vmatpush1.bf16.msra.mxu0 %v2467
    %2623 = vmatprep.subr.bf16.mxu0 0
    %2624 = vmatpush1.bf16.msra.mxu0 %v2466
    %2625 = vmatprep.subr.bf16.mxu0 0
    %2626 = vmatpush1.bf16.msra.mxu0 %v2465
    %2627 = vmatprep.subr.bf16.mxu0 0
    %2628 = vmatpush1.bf16.msra.mxu0 %v2464
    %2629 = vmatprep.subr.bf16.mxu0 0
    %2630 = vmatpush1.bf16.msra.mxu0 %v2463
    %2631 = vmatprep.subr.bf16.mxu0 0
    %2632 = vmatpush2.bf16.msra.mxu0 %v2478
    %2633 = vmatprep.subr.bf16.mxu0 0
    %2634 = vmatpush2.bf16.msra.mxu0 %v2477
    %2635 = vmatprep.subr.bf16.mxu0 0
    %2636 = vmatpush2.bf16.msra.mxu0 %v2476
    %2637 = vmatprep.subr.bf16.mxu0 0
    %2638 = vmatpush2.bf16.msra.mxu0 %v2475
    %2639 = vmatprep.subr.bf16.mxu0 0
    %2640 = vmatpush2.bf16.msra.mxu0 %v2474
    %2641 = vmatprep.subr.bf16.mxu0 0
    %2642 = vmatpush2.bf16.msra.mxu0 %v2473
    %2643 = vmatprep.subr.bf16.mxu0 0
    %2644 = vmatpush2.bf16.msra.mxu0 %v2472
    %2645 = vmatprep.subr.bf16.mxu0 0
    %2646 = vmatpush2.bf16.msra.mxu0 %v2471
    %2647 = vmatprep.mubr.bf16.mxu0 %v2051
    %2648 = vmatmul.mubr.bf16.gmra.mxu0 %v2050
    %v2649 = vpop.f32.mrf.mxu0
    %v2650 = vadd.f32 %v2610, %v2649
    %v2651 = vpop.f32.mrf.mxu0
    %v2652 = vpop.f32.mrf.mxu0
    %v2653 = vpop.f32.mrf.mxu0
    %2654 = vdwg.mxu0
    %2655 = vmatprep.subr.bf16.mxu0 0
    %2656 = vmatpush1.bf16.msra.mxu0 %v2486
    %2657 = vmatprep.subr.bf16.mxu0 0
    %2658 = vmatpush1.bf16.msra.mxu0 %v2485
    %2659 = vmatprep.subr.bf16.mxu0 0
    %2660 = vmatpush1.bf16.msra.mxu0 %v2484
    %2661 = vmatprep.subr.bf16.mxu0 0
    %2662 = vmatpush1.bf16.msra.mxu0 %v2483
    %2663 = vmatprep.subr.bf16.mxu0 0
    %2664 = vmatpush1.bf16.msra.mxu0 %v2482
    %2665 = vmatprep.subr.bf16.mxu0 0
    %2666 = vmatpush1.bf16.msra.mxu0 %v2481
    %2667 = vmatprep.subr.bf16.mxu0 0
    %2668 = vmatpush1.bf16.msra.mxu0 %v2480
    %2669 = vmatprep.subr.bf16.mxu0 0
    %2670 = vmatpush1.bf16.msra.mxu0 %v2479
    %2671 = vmatprep.subr.bf16.mxu0 0
    %2672 = vmatpush2.bf16.msra.mxu0 %v2494
    %2673 = vmatprep.subr.bf16.mxu0 0
    %2674 = vmatpush2.bf16.msra.mxu0 %v2493
    %2675 = vmatprep.subr.bf16.mxu0 0
    %2676 = vmatpush2.bf16.msra.mxu0 %v2492
    %2677 = vmatprep.subr.bf16.mxu0 0
    %2678 = vmatpush2.bf16.msra.mxu0 %v2491
    %2679 = vmatprep.subr.bf16.mxu0 0
    %2680 = vmatpush2.bf16.msra.mxu0 %v2490
    %2681 = vmatprep.subr.bf16.mxu0 0
    %2682 = vmatpush2.bf16.msra.mxu0 %v2489
    %2683 = vmatprep.subr.bf16.mxu0 0
    %2684 = vmatpush2.bf16.msra.mxu0 %v2488
    %2685 = vmatprep.subr.bf16.mxu0 0
    %2686 = vmatpush2.bf16.msra.mxu0 %v2487
    %2687 = vmatprep.mubr.bf16.mxu0 %v2053
    %2688 = vmatmul.mubr.bf16.gmra.mxu0 %v2052
    %v2689 = vpop.f32.mrf.mxu0
    %v2690 = vadd.f32 %v2650, %v2689
    %v2691 = vpop.f32.mrf.mxu0
    %v2692 = vpop.f32.mrf.mxu0
    %v2693 = vpop.f32.mrf.mxu0
    %2694 = vdwg.mxu0
    %2695 = vmatprep.subr.bf16.mxu0 0
    %2696 = vmatpush1.bf16.msra.mxu0 %v2502
    %2697 = vmatprep.subr.bf16.mxu0 0
    %2698 = vmatpush1.bf16.msra.mxu0 %v2501
    %2699 = vmatprep.subr.bf16.mxu0 0
    %2700 = vmatpush1.bf16.msra.mxu0 %v2500
    %2701 = vmatprep.subr.bf16.mxu0 0
    %2702 = vmatpush1.bf16.msra.mxu0 %v2499
    %2703 = vmatprep.subr.bf16.mxu0 0
    %2704 = vmatpush1.bf16.msra.mxu0 %v2498
    %2705 = vmatprep.subr.bf16.mxu0 0
    %2706 = vmatpush1.bf16.msra.mxu0 %v2497
    %2707 = vmatprep.subr.bf16.mxu0 0
    %2708 = vmatpush1.bf16.msra.mxu0 %v2496
    %2709 = vmatprep.subr.bf16.mxu0 0
    %2710 = vmatpush1.bf16.msra.mxu0 %v2495
    %2711 = vmatprep.subr.bf16.mxu0 0
    %2712 = vmatpush2.bf16.msra.mxu0 %v2510
    %2713 = vmatprep.subr.bf16.mxu0 0
    %2714 = vmatpush2.bf16.msra.mxu0 %v2509
    %2715 = vmatprep.subr.bf16.mxu0 0
    %2716 = vmatpush2.bf16.msra.mxu0 %v2508
    %2717 = vmatprep.subr.bf16.mxu0 0
    %2718 = vmatpush2.bf16.msra.mxu0 %v2507
    %2719 = vmatprep.subr.bf16.mxu0 0
    %2720 = vmatpush2.bf16.msra.mxu0 %v2506
    %2721 = vmatprep.subr.bf16.mxu0 0
    %2722 = vmatpush2.bf16.msra.mxu0 %v2505
    %2723 = vmatprep.subr.bf16.mxu0 0
    %2724 = vmatpush2.bf16.msra.mxu0 %v2504
    %2725 = vmatprep.subr.bf16.mxu0 0
    %2726 = vmatpush2.bf16.msra.mxu0 %v2503
    %2727 = vmatprep.mubr.bf16.mxu0 %v2055
    %2728 = vmatmul.mubr.bf16.gmra.mxu0 %v2054
    %v2729 = vpop.f32.mrf.mxu0
    %v2730 = vadd.f32 %v2690, %v2729
    %v2731 = vpop.f32.mrf.mxu0
    %v2732 = vpop.f32.mrf.mxu0
    %v2733 = vpop.f32.mrf.mxu0
    %2734 = vdwg.mxu0
    %v2735 = vmax.f32 %v2730, 0.0
    %v2736 = vpack.c.bf16 %v2735, %v2735
    %v2737 = vld [vmem:[#allocation10] sm:$0xf]
    %v2738 = vld [vmem:[#allocation10 + $0x4] sm:$0xf]
    %v2739 = vld [vmem:[#allocation10 + $0x8] sm:$0xf]
    %v2740 = vld [vmem:[#allocation10 + $0xc] sm:$0xf]
    %v2741 = vld [vmem:[#allocation10 + $0x10] sm:$0xf]
    %v2742 = vld [vmem:[#allocation10 + $0x14] sm:$0xf]
    %v2743 = vld [vmem:[#allocation10 + $0x18] sm:$0xf]
    %v2744 = vld [vmem:[#allocation10 + $0x1c] sm:$0xf]
    %v2745 = vld [vmem:[#allocation10 + $0x20] sm:$0xf]
    %v2746 = vld [vmem:[#allocation10 + $0x24] sm:$0xf]
    %v2747 = vld [vmem:[#allocation10 + $0x28] sm:$0xf]
    %v2748 = vld [vmem:[#allocation10 + $0x2c] sm:$0xf]
    %v2749 = vld [vmem:[#allocation10 + $0x30] sm:$0xf]
    %v2750 = vld [vmem:[#allocation10 + $0x34] sm:$0xf]
    %v2751 = vld [vmem:[#allocation10 + $0x38] sm:$0xf]
    %v2752 = vld [vmem:[#allocation10 + $0x3c] sm:$0xf]
    %v2753 = vld [vmem:[%s6] sm:$0x1]
    %v2755 = vlaneseq
    %v2756 = vshrl.u32 %v2755, 7
    %v2757 = vsub.s32 0, %v2756
    %v2758 = vrot.slane %v2753, %v2757
    %v2776 = vunpack.c.l.b16 %v2737
    %v2777 = vunpack.c.l.b16 %v2738
    %v2778 = vunpack.c.l.b16 %v2739
    %v2779 = vunpack.c.l.b16 %v2740
    %v2780 = vunpack.c.l.b16 %v2741
    %v2781 = vunpack.c.l.b16 %v2742
    %v2782 = vunpack.c.l.b16 %v2743
    %v2783 = vunpack.c.l.b16 %v2744
    %v2784 = vunpack.c.l.b16 %v2745
    %v2785 = vunpack.c.l.b16 %v2746
    %v2786 = vunpack.c.l.b16 %v2747
    %v2787 = vunpack.c.l.b16 %v2748
    %v2788 = vunpack.c.l.b16 %v2749
    %v2789 = vunpack.c.l.b16 %v2750
    %v2790 = vunpack.c.l.b16 %v2751
    %v2791 = vunpack.c.l.b16 %v2752
    %v2792 = vpack.c.b16 %v2777, %v2776
    %v2793 = vpack.c.b16 %v2779, %v2778
    %v2794 = vpack.c.b16 %v2781, %v2780
    %v2795 = vpack.c.b16 %v2783, %v2782
    %v2796 = vpack.c.b16 %v2785, %v2784
    %v2797 = vpack.c.b16 %v2787, %v2786
    %v2798 = vpack.c.b16 %v2789, %v2788
    %v2799 = vpack.c.b16 %v2791, %v2790
    %2808 = vmatprep.subr.bf16.mxu0 0
    %2809 = vmatpush1.bf16.msra.mxu0 %v2799
    %2810 = vmatprep.subr.bf16.mxu0 0
    %2811 = vmatpush1.bf16.msra.mxu0 %v2798
    %2812 = vmatprep.subr.bf16.mxu0 0
    %2813 = vmatpush1.bf16.msra.mxu0 %v2797
    %2814 = vmatprep.subr.bf16.mxu0 0
    %2815 = vmatpush1.bf16.msra.mxu0 %v2796
    %2816 = vmatprep.subr.bf16.mxu0 0
    %2817 = vmatpush1.bf16.msra.mxu0 %v2795
    %2818 = vmatprep.subr.bf16.mxu0 0
    %2819 = vmatpush1.bf16.msra.mxu0 %v2794
    %2820 = vmatprep.subr.bf16.mxu0 0
    %2821 = vmatpush1.bf16.msra.mxu0 %v2793
    %2822 = vmatprep.subr.bf16.mxu0 0
    %2823 = vmatpush1.bf16.msra.mxu0 %v2792
    %2824 = vmatprep.subr.bf16.mxu0 0
    %2825 = vmatpush2.bf16.msra.mxu0 0
    %2826 = vmatprep.subr.bf16.mxu0 0
    %2827 = vmatpush2.bf16.msra.mxu0 0
    %2828 = vmatprep.subr.bf16.mxu0 0
    %2829 = vmatpush2.bf16.msra.mxu0 0
    %2830 = vmatprep.subr.bf16.mxu0 0
    %2831 = vmatpush2.bf16.msra.mxu0 0
    %2832 = vmatprep.subr.bf16.mxu0 0
    %2833 = vmatpush2.bf16.msra.mxu0 0
    %2834 = vmatprep.subr.bf16.mxu0 0
    %2835 = vmatpush2.bf16.msra.mxu0 0
    %2836 = vmatprep.subr.bf16.mxu0 0
    %2837 = vmatpush2.bf16.msra.mxu0 0
    %2838 = vmatprep.subr.bf16.mxu0 0
    %2839 = vmatpush2.bf16.msra.mxu0 0
    %2840 = vmatprep.mubr.bf16.mxu0 0
    %2841 = vmatmul.mubr.bf16.gmra.mxu0 %v2736
    %v2842 = vpop.f32.mrf.mxu0
    %v2843 = vadd.f32 %v2758, %v2842
    %v2844 = vpop.f32.mrf.mxu0
    %v2845 = vpop.f32.mrf.mxu0
    %v2846 = vpop.f32.mrf.mxu0
    %2847 = vdwg.mxu0
    %v2848 = vsub.f32 0.0, %v2843
    %v2849 = vmul.f32 %v2848, 1.442695
    %v2850 = vpow.pop %v2849
    %v2851 = vadd.f32 %v2850, 1.0
    %v2852 = vrcp.pop %v2851
    %vm2853 = vcmask 15360
    %2854 = vst.msk [vmem:[%s7] sm:$0xff] %vm2853, %v2852
    // Predicated region
    $region50: #{classifier_forward.1} parent=1 // pred_check
      _
    $region51: #{classifier_forward.1} parent=1 // pred_check_branch
      %2856 = sbr.rel (0) target = $region53
    $region52: #{classifier_forward.1} parent=1 // pred_region
      _
    $region53: #{classifier_forward.1} parent=1 // pred_fallthru
      _
    // Predicated region
    $region54: #{classifier_forward.1} parent=1 // pred_check
      _
    $region55: #{classifier_forward.1} parent=1 // pred_check_branch
      %2858 = sbr.rel (0) target = $region57
    $region56: #{classifier_forward.1} parent=1 // pred_region
      _
    $region57: #{classifier_forward.1} parent=1 // pred_fallthru
      _
    %2859 = vsyncpa [#allocation4], 1
    %2860 = vsyncpa [#allocation6], 1
    %2861 = vsyncpa [#allocation9], 1

</llo_original>
